<compile_context>
chip_gen: v7x
topology: tpu7x:2x2x1
jax: 0.10.0
libtpu: 0.0.40
codegen_flags: <defaults>
</compile_context>

<pallas_src>
import math

import jax
import jax.numpy as jnp
from jax.experimental import pallas as pl
from jax.experimental.pallas import tpu as pltpu

_LANE = 128


def _round_up(n, m):
    return (n + m - 1) // m * m


def _vmem_cap_bytes():
    """Usable-VMEM cap per generation: physical capacity minus headroom for
    Mosaic internal scratch (v7x: 64 MiB -> ~56 MiB; v5e/v6e: 128 -> ~112 MiB)."""
    try:
        cap = int(pltpu.get_tpu_info().vmem_capacity_bytes)
    except Exception:
        cap = 64 << 20   # conservative (v7x-sized) fallback
    return max(cap - max(cap // 8, 8 << 20), 16 << 20)


def _choose_tile_b(batch, per_row_bytes, resident_bytes, vmem_budget,
                   max_tile=2048):
    """Largest power-of-two batch tile that fits the VMEM budget, clipped so
    the 1-D grid has >= 2 steps (lets dimension_semantics=('parallel',) shard
    the batch across both TensorCores on v7x)."""
    avail = vmem_budget - resident_bytes
    max_rows = max(avail // max(per_row_bytes, 1), 8)
    tb = 8
    while tb * 2 <= min(max_rows, max_tile):
        tb *= 2
    if batch > 16:
        tb = min(tb, max(8, _round_up(pl.cdiv(batch, 2), 8)))
    else:
        tb = min(tb, 8)
    return int(tb)


def _make_mlp_kernel(n_inputs, n_layers, matmul_dtype, use_log1p):
    """Fused kernel: whole layer stack on one batch tile, weights VMEM-resident."""

    def softplus(z):
        tail = jnp.exp(-jnp.abs(z))
        tail = jnp.log1p(tail) if use_log1p else jnp.log(1.0 + tail)
        return jnp.maximum(z, 0.0) + tail

    def kernel(*refs):
        in_refs = refs[:n_inputs]
        out_ref = refs[-1]
        params = refs[n_inputs:-1]   # (w1_0..w1_{n_inputs-1}, b1, w2, b2, ...)

        # Layer 1: sum of per-input partial matmuls == cat(inputs, 1) @ W1.T.
        acc = None
        for i in range(n_inputs):
            part = jnp.dot(in_refs[i][...].astype(matmul_dtype), params[i][...],
                           preferred_element_type=jnp.float32)
            acc = part if acc is None else acc + part
        z = acc + params[n_inputs][...]          # f32 bias broadcast
        h = softplus(z)                          # f32 epilogue
        if n_layers > 1:
            h = h.astype(matmul_dtype)           # bf16 between layers

        # Layers 2..n.
        idx = n_inputs + 1
        for li in range(1, n_layers):
            w = params[idx][...]
            b = params[idx + 1][...]
            idx += 2
            z = jnp.dot(h, w, preferred_element_type=jnp.float32) + b
            h = softplus(z)
            if li < n_layers - 1:
                h = h.astype(matmul_dtype)

        out_ref[...] = h.astype(out_ref.dtype)

    return kernel


def prepare_mlp_params(weights, biases, input_dims, matmul_dtype=jnp.bfloat16):
    """One-time prep outside the hot path.

    * W1 (PyTorch layout (out, in)) is split along `in` into one chunk per
      input part and transposed to (d_i, dp_out1): the kernel never has to
      concatenate the inputs, and the first-layer K is NOT padded.
    * Later weights are transposed to (dp_in, dp_out); output-feature dims are
      zero-padded to multiples of 128 (lane-dense); K pad rows are zero so the
      softplus(0) values living in the pad columns of the previous activation
      contribute nothing.
    * Weights are cast to the MXU input dtype; biases stay f32.
    """
    n_layers = len(weights)
    assert n_layers >= 1 and len(biases) == n_layers
    d_outs = [int(W.shape[0]) for W in weights]
    dp_outs = [_round_up(d, _LANE) for d in d_outs]

    packed = []
    # Layer 1: one chunk per input part.
    W1, b1 = weights[0], biases[0]
    assert int(W1.shape[1]) == sum(int(d) for d in input_dims)
    off = 0
    for d in input_dims:
        d = int(d)
        chunk = W1[:, off:off + d].T.astype(matmul_dtype)       # (d, d_out1)
        Wp = jnp.zeros((d, dp_outs[0]), dtype=matmul_dtype)
        packed.append(Wp.at[:, :d_outs[0]].set(chunk))
        off += d
    bp = jnp.zeros((1, dp_outs[0]), dtype=jnp.float32)
    packed.append(bp.at[:, :d_outs[0]].set(b1.astype(jnp.float32)[None, :]))

    # Layers 2..n.
    prev_d, prev_dp = d_outs[0], dp_outs[0]
    for li in range(1, n_layers):
        W, b = weights[li], biases[li]
        Wp = jnp.zeros((prev_dp, dp_outs[li]), dtype=matmul_dtype)
        Wp = Wp.at[:prev_d, :d_outs[li]].set(W.T.astype(matmul_dtype))
        bp = jnp.zeros((1, dp_outs[li]), dtype=jnp.float32)
        bp = bp.at[:, :d_outs[li]].set(b.astype(jnp.float32)[None, :])
        packed.extend([Wp, bp])
        prev_d, prev_dp = d_outs[li], dp_outs[li]

    meta = dict(input_dims=[int(d) for d in input_dims],
                out_dims=d_outs, out_padded=dp_outs)
    return packed, meta


def mlp_forward(inputs, packed_params, meta, *, tile_b=None,
                matmul_dtype=jnp.bfloat16, out_dtype=jnp.float32):
    """inputs: list of (B, d_i) arrays; packed_params/meta from prepare_mlp_params.

    out_dtype=jnp.bfloat16 halves the output store / HBM writeback cost
    (useful on v5e's single vector-store slot) if the consumer tolerates it.
    """
    n_inputs = len(meta["input_dims"])
    n_layers = len(meta["out_dims"])
    assert len(inputs) == n_inputs
    assert all(int(a.shape[1]) == d for a, d in zip(inputs, meta["input_dims"]))
    B = int(inputs[0].shape[0])
    d_last = meta["out_dims"][-1]
    dp_last = meta["out_padded"][-1]
    max_dp = max(meta["out_padded"])

    # VMEM budget: resident params (x2 in case of double buffering),
    # double-buffered input/output tiles, per-layer f32 intermediates + bf16 copy.
    resident = sum(int(p.size) * jnp.dtype(p.dtype).itemsize
                   for p in packed_params)
    per_row = 2 * sum(int(a.shape[1]) * jnp.dtype(a.dtype).itemsize
                      for a in inputs)
    per_row += 2 * dp_last * jnp.dtype(out_dtype).itemsize
    per_row += 3 * max_dp * 4            # f32 z + f32 h + bf16 h (+ slack)

    cap = _vmem_cap_bytes()
    if tile_b is None:
        tile_b = _choose_tile_b(B, per_row, 2 * resident, int(cap * 0.8))
    tile_b = max(8, int(tile_b))
    grid = (pl.cdiv(B, tile_b),)

    footprint = 2 * resident + tile_b * per_row
    vmem_limit = int(min(cap, max(int(footprint * 1.5) + (4 << 20), 16 << 20)))

    def build(optimized):
        kernel = _make_mlp_kernel(n_inputs, n_layers, matmul_dtype,
                                  use_log1p=optimized)
        in_specs = [pl.BlockSpec((tile_b, int(a.shape[1])), lambda i: (i, 0))
                    for a in inputs]
        for p in packed_params:
            if optimized:
                # Constant index_map -> fetched once; a single buffer halves
                # the resident weight/bias VMEM footprint.
                in_specs.append(pl.BlockSpec(tuple(p.shape), lambda i: (0, 0),
                                             pipeline_mode=pl.Buffered(1)))
            else:
                in_specs.append(pl.BlockSpec(tuple(p.shape), lambda i: (0, 0)))
        return pl.pallas_call(
            kernel,
            out_shape=jax.ShapeDtypeStruct((B, dp_last), out_dtype),
            grid=grid,
            in_specs=in_specs,
            out_specs=pl.BlockSpec((tile_b, dp_last), lambda i: (i, 0)),
            compiler_params=pltpu.CompilerParams(
                dimension_semantics=("parallel",),
                vmem_limit_bytes=vmem_limit),
        )

    try:
        out = build(True)(*inputs, *packed_params)
        out = jax.block_until_ready(out)
    except Exception:
        # TODO(synk): this jax/Mosaic build rejected pl.Buffered(1) (or log1p);
        # fall back to default double buffering + log(1+exp) softplus tail.
        out = build(False)(*inputs, *packed_params)

    return out[:, :d_last]


def reference_forward(inputs, weights, biases):
    x = jnp.concatenate([a.astype(jnp.float32) for a in inputs], axis=1)
    for W, b in zip(weights, biases):
        x = jax.nn.softplus(x @ W.T.astype(jnp.float32) + b.astype(jnp.float32))
    return x


if __name__ == "__main__":
    # MLP(input_dims=[16, 16], hidden_dims=[64, 32], nonlin='softplus',
    #     weight_norm=False, batch_norm=False, dropout_rate=0.0)
    B = 256                      # large enough to give >= 2 batch-grid steps
    input_dims = [16, 16]
    hidden_dims = [64, 32]

    key = jax.random.PRNGKey(0)
    keys = jax.random.split(key, len(input_dims) + 2 * len(hidden_dims))

    inputs = [jax.random.normal(keys[i], (B, d), dtype=jnp.float32)
              for i, d in enumerate(input_dims)]

    # nn.Linear default init: U(-1/sqrt(fan_in), 1/sqrt(fan_in)) for W and b.
    weights, biases = [], []
    prev = sum(input_dims)
    for li, h in enumerate(hidden_dims):
        bound = 1.0 / math.sqrt(prev)
        kw = keys[len(input_dims) + 2 * li]
        kb = keys[len(input_dims) + 2 * li + 1]
        weights.append(jax.random.uniform(kw, (h, prev), minval=-bound,
                                          maxval=bound, dtype=jnp.float32))
        biases.append(jax.random.uniform(kb, (h,), minval=-bound,
                                         maxval=bound, dtype=jnp.float32))
        prev = h

    packed, meta = prepare_mlp_params(weights, biases, input_dims)

    out = mlp_forward(inputs, packed, meta)
    out = jax.block_until_ready(out)

    ref = reference_forward(inputs, weights, biases)
    assert out.shape == (B, hidden_dims[-1])
    # bf16 matmul inputs + bf16 inter-layer activations -> loosened tolerance
    # vs the pure-f32 reference (documented precision tradeoff).
    err = float(jnp.max(jnp.abs(out - ref)))
    assert jnp.allclose(out, ref, atol=1e-1, rtol=5e-2), err

    print("KERNEL_OK")
</pallas_src>

<mosaic_0001>
module attributes {stable_mosaic.version = 11 : i64} {
  func.func @kernel(%arg0: i32, %arg1: memref<128x16xf32, #tpu.memory_space<vmem>>, %arg2: memref<128x16xf32, #tpu.memory_space<vmem>>, %arg3: memref<16x128xbf16, #tpu.memory_space<vmem>>, %arg4: memref<16x128xbf16, #tpu.memory_space<vmem>>, %arg5: memref<1x128xf32, #tpu.memory_space<vmem>>, %arg6: memref<128x128xbf16, #tpu.memory_space<vmem>>, %arg7: memref<1x128xf32, #tpu.memory_space<vmem>>, %arg8: memref<128x128xf32, #tpu.memory_space<vmem>>) attributes {dimension_semantics = [#tpu.dimension_semantics<parallel>], iteration_bounds = array<i64: 2>, scalar_prefetch = 0 : i64, scratch_operands = 0 : i64, tpu.core_type = #tpu.core_type<tc>, window_params = [{transform_indices = @transform_0, window_bounds = array<i64: 128, 16>}, {transform_indices = @transform_1, window_bounds = array<i64: 128, 16>}, {pipeline_mode = #tpu.pipeline_mode<synchronous>, transform_indices = @transform_2, window_bounds = array<i64: 16, 128>}, {pipeline_mode = #tpu.pipeline_mode<synchronous>, transform_indices = @transform_3, window_bounds = array<i64: 16, 128>}, {pipeline_mode = #tpu.pipeline_mode<synchronous>, transform_indices = @transform_4, window_bounds = array<i64: 1, 128>}, {pipeline_mode = #tpu.pipeline_mode<synchronous>, transform_indices = @transform_5, window_bounds = array<i64: 128, 128>}, {pipeline_mode = #tpu.pipeline_mode<synchronous>, transform_indices = @transform_6, window_bounds = array<i64: 1, 128>}, {transform_indices = @transform_7, window_bounds = array<i64: 128, 128>}]} {
    %c0 = arith.constant 0 : index
    %c0_0 = arith.constant 0 : index
    %0 = vector.load %arg1[%c0, %c0_0] : memref<128x16xf32, #tpu.memory_space<vmem>>, vector<128x16xf32>
    %1 = arith.truncf %0 : vector<128x16xf32> to vector<128x16xbf16>
    %c0_1 = arith.constant 0 : index
    %c0_2 = arith.constant 0 : index
    %2 = vector.load %arg3[%c0_1, %c0_2] : memref<16x128xbf16, #tpu.memory_space<vmem>>, vector<16x128xbf16>
    %cst = arith.constant dense<0.000000e+00> : vector<128x128xf32>
    %3 = tpu.matmul %1, %2, %cst {dimension_numbers = #tpu.dot_dimension_numbers<[1], [0], [0], [1], [0, 0, 1, 1], [], []>} : vector<128x16xbf16>, vector<16x128xbf16>, vector<128x128xf32> -> vector<128x128xf32>
    %c0_3 = arith.constant 0 : index
    %c0_4 = arith.constant 0 : index
    %4 = vector.load %arg2[%c0_3, %c0_4] : memref<128x16xf32, #tpu.memory_space<vmem>>, vector<128x16xf32>
    %5 = arith.truncf %4 : vector<128x16xf32> to vector<128x16xbf16>
    %c0_5 = arith.constant 0 : index
    %c0_6 = arith.constant 0 : index
    %6 = vector.load %arg4[%c0_5, %c0_6] : memref<16x128xbf16, #tpu.memory_space<vmem>>, vector<16x128xbf16>
    %cst_7 = arith.constant dense<0.000000e+00> : vector<128x128xf32>
    %7 = tpu.matmul %5, %6, %cst_7 {dimension_numbers = #tpu.dot_dimension_numbers<[1], [0], [0], [1], [0, 0, 1, 1], [], []>} : vector<128x16xbf16>, vector<16x128xbf16>, vector<128x128xf32> -> vector<128x128xf32>
    %8 = arith.addf %3, %7 : vector<128x128xf32>
    %c0_8 = arith.constant 0 : index
    %c0_9 = arith.constant 0 : index
    %9 = vector.load %arg5[%c0_8, %c0_9] : memref<1x128xf32, #tpu.memory_space<vmem>>, vector<1x128xf32>
    %10 = vector.broadcast %9 : vector<1x128xf32> to vector<128x128xf32>
    %11 = arith.addf %8, %10 : vector<128x128xf32>
    %12 = math.absf %11 : vector<128x128xf32>
    %cst_10 = arith.constant 0.000000e+00 : f32
    %13 = vector.broadcast %cst_10 : f32 to vector<128x128xf32>
    %14 = arith.subf %13, %12 : vector<128x128xf32>
    %15 = math.exp %14 : vector<128x128xf32>
    %16 = math.log1p %15 : vector<128x128xf32>
    %cst_11 = arith.constant 0.000000e+00 : f32
    %17 = vector.broadcast %cst_11 : f32 to vector<128x128xf32>
    %18 = arith.maximumf %11, %17 : vector<128x128xf32>
    %19 = arith.addf %18, %16 : vector<128x128xf32>
    %20 = arith.truncf %19 : vector<128x128xf32> to vector<128x128xbf16>
    %c0_12 = arith.constant 0 : index
    %c0_13 = arith.constant 0 : index
    %21 = vector.load %arg6[%c0_12, %c0_13] : memref<128x128xbf16, #tpu.memory_space<vmem>>, vector<128x128xbf16>
    %c0_14 = arith.constant 0 : index
    %c0_15 = arith.constant 0 : index
    %22 = vector.load %arg7[%c0_14, %c0_15] : memref<1x128xf32, #tpu.memory_space<vmem>>, vector<1x128xf32>
    %cst_16 = arith.constant dense<0.000000e+00> : vector<128x128xf32>
    %23 = tpu.matmul %20, %21, %cst_16 {dimension_numbers = #tpu.dot_dimension_numbers<[1], [0], [0], [1], [0, 0, 1, 1], [], []>} : vector<128x128xbf16>, vector<128x128xbf16>, vector<128x128xf32> -> vector<128x128xf32>
    %24 = vector.broadcast %22 : vector<1x128xf32> to vector<128x128xf32>
    %25 = arith.addf %23, %24 : vector<128x128xf32>
    %26 = math.absf %25 : vector<128x128xf32>
    %cst_17 = arith.constant 0.000000e+00 : f32
    %27 = vector.broadcast %cst_17 : f32 to vector<128x128xf32>
    %28 = arith.subf %27, %26 : vector<128x128xf32>
    %29 = math.exp %28 : vector<128x128xf32>
    %30 = math.log1p %29 : vector<128x128xf32>
    %cst_18 = arith.constant 0.000000e+00 : f32
    %31 = vector.broadcast %cst_18 : f32 to vector<128x128xf32>
    %32 = arith.maximumf %25, %31 : vector<128x128xf32>
    %33 = arith.addf %32, %30 : vector<128x128xf32>
    %c0_19 = arith.constant 0 : index
    %c0_20 = arith.constant 0 : index
    %34 = vector.load %arg8[%c0_19, %c0_20] : memref<128x128xf32, #tpu.memory_space<vmem>>, vector<128x128xf32>
    tpu.vector_store %arg8[%c0_19, %c0_20], %33 {strides = array<i32>} : memref<128x128xf32, #tpu.memory_space<vmem>>, vector<128x128xf32>,
    return
  }
  func.func @transform_0(%arg0: i32) -> (i32, i32) {
    %c0_i32 = arith.constant 0 : i32
    %c0_i32_0 = arith.constant 0 : i32
    return %arg0, %c0_i32 : i32, i32
  }
  func.func @transform_1(%arg0: i32) -> (i32, i32) {
    %c0_i32 = arith.constant 0 : i32
    %c0_i32_0 = arith.constant 0 : i32
    return %arg0, %c0_i32 : i32, i32
  }
  func.func @transform_2(%arg0: i32) -> (i32, i32) {
    %c0_i32 = arith.constant 0 : i32
    %c0_i32_0 = arith.constant 0 : i32
    %c0_i32_1 = arith.constant 0 : i32
    return %c0_i32, %c0_i32_0 : i32, i32
  }
  func.func @transform_3(%arg0: i32) -> (i32, i32) {
    %c0_i32 = arith.constant 0 : i32
    %c0_i32_0 = arith.constant 0 : i32
    %c0_i32_1 = arith.constant 0 : i32
    return %c0_i32, %c0_i32_0 : i32, i32
  }
  func.func @transform_4(%arg0: i32) -> (i32, i32) {
    %c0_i32 = arith.constant 0 : i32
    %c0_i32_0 = arith.constant 0 : i32
    %c0_i32_1 = arith.constant 0 : i32
    return %c0_i32, %c0_i32_0 : i32, i32
  }
  func.func @transform_5(%arg0: i32) -> (i32, i32) {
    %c0_i32 = arith.constant 0 : i32
    %c0_i32_0 = arith.constant 0 : i32
    %c0_i32_1 = arith.constant 0 : i32
    return %c0_i32, %c0_i32_0 : i32, i32
  }
  func.func @transform_6(%arg0: i32) -> (i32, i32) {
    %c0_i32 = arith.constant 0 : i32
    %c0_i32_0 = arith.constant 0 : i32
    %c0_i32_1 = arith.constant 0 : i32
    return %c0_i32, %c0_i32_0 : i32, i32
  }
  func.func @transform_7(%arg0: i32) -> (i32, i32) {
    %c0_i32 = arith.constant 0 : i32
    %c0_i32_0 = arith.constant 0 : i32
    return %arg0, %c0_i32 : i32, i32
  }
}

module attributes {stable_mosaic.version = 11 : i64} {
  func.func @kernel(%arg0: i32, %arg1: memref<128x16xf32, #tpu.memory_space<vmem>>, %arg2: memref<128x16xf32, #tpu.memory_space<vmem>>, %arg3: memref<16x128xbf16, #tpu.memory_space<vmem>>, %arg4: memref<16x128xbf16, #tpu.memory_space<vmem>>, %arg5: memref<1x128xf32, #tpu.memory_space<vmem>>, %arg6: memref<128x128xbf16, #tpu.memory_space<vmem>>, %arg7: memref<1x128xf32, #tpu.memory_space<vmem>>, %arg8: memref<128x128xf32, #tpu.memory_space<vmem>>) attributes {dimension_semantics = [#tpu.dimension_semantics<parallel>], iteration_bounds = array<i64: 2>, scalar_prefetch = 0 : i64, scratch_operands = 0 : i64, tpu.core_type = #tpu.core_type<tc>, window_params = [{transform_indices = @transform_0, window_bounds = array<i64: 128, 16>}, {transform_indices = @transform_1, window_bounds = array<i64: 128, 16>}, {pipeline_mode = #tpu.pipeline_mode<synchronous>, transform_indices = @transform_2, window_bounds = array<i64: 16, 128>}, {pipeline_mode = #tpu.pipeline_mode<synchronous>, transform_indices = @transform_3, window_bounds = array<i64: 16, 128>}, {pipeline_mode = #tpu.pipeline_mode<synchronous>, transform_indices = @transform_4, window_bounds = array<i64: 1, 128>}, {pipeline_mode = #tpu.pipeline_mode<synchronous>, transform_indices = @transform_5, window_bounds = array<i64: 128, 128>}, {pipeline_mode = #tpu.pipeline_mode<synchronous>, transform_indices = @transform_6, window_bounds = array<i64: 1, 128>}, {transform_indices = @transform_7, window_bounds = array<i64: 128, 128>}]} {
    %c0 = arith.constant 0 : index
    %c0_0 = arith.constant 0 : index
    %0 = vector.load %arg1[%c0, %c0_0] : memref<128x16xf32, #tpu.memory_space<vmem>>, vector<128x16xf32>
    %1 = arith.truncf %0 : vector<128x16xf32> to vector<128x16xbf16>
    %c0_1 = arith.constant 0 : index
    %c0_2 = arith.constant 0 : index
    %2 = vector.load %arg3[%c0_1, %c0_2] : memref<16x128xbf16, #tpu.memory_space<vmem>>, vector<16x128xbf16>
    %cst = arith.constant dense<0.000000e+00> : vector<128x128xf32>
    %3 = tpu.matmul %1, %2, %cst {dimension_numbers = #tpu.dot_dimension_numbers<[1], [0], [0], [1], [0, 0, 1, 1], [], []>} : vector<128x16xbf16>, vector<16x128xbf16>, vector<128x128xf32> -> vector<128x128xf32>
    %c0_3 = arith.constant 0 : index
    %c0_4 = arith.constant 0 : index
    %4 = vector.load %arg2[%c0_3, %c0_4] : memref<128x16xf32, #tpu.memory_space<vmem>>, vector<128x16xf32>
    %5 = arith.truncf %4 : vector<128x16xf32> to vector<128x16xbf16>
    %c0_5 = arith.constant 0 : index
    %c0_6 = arith.constant 0 : index
    %6 = vector.load %arg4[%c0_5, %c0_6] : memref<16x128xbf16, #tpu.memory_space<vmem>>, vector<16x128xbf16>
    %cst_7 = arith.constant dense<0.000000e+00> : vector<128x128xf32>
    %7 = tpu.matmul %5, %6, %cst_7 {dimension_numbers = #tpu.dot_dimension_numbers<[1], [0], [0], [1], [0, 0, 1, 1], [], []>} : vector<128x16xbf16>, vector<16x128xbf16>, vector<128x128xf32> -> vector<128x128xf32>
    %8 = arith.addf %3, %7 : vector<128x128xf32>
    %c0_8 = arith.constant 0 : index
    %c0_9 = arith.constant 0 : index
    %9 = vector.load %arg5[%c0_8, %c0_9] : memref<1x128xf32, #tpu.memory_space<vmem>>, vector<1x128xf32>
    %10 = vector.broadcast %9 : vector<1x128xf32> to vector<128x128xf32>
    %11 = arith.addf %8, %10 : vector<128x128xf32>
    %12 = math.absf %11 : vector<128x128xf32>
    %cst_10 = arith.constant 0.000000e+00 : f32
    %13 = vector.broadcast %cst_10 : f32 to vector<128x128xf32>
    %14 = arith.subf %13, %12 : vector<128x128xf32>
    %15 = math.exp %14 : vector<128x128xf32>
    %cst_11 = arith.constant 1.000000e+00 : f32
    %16 = vector.broadcast %cst_11 : f32 to vector<128x128xf32>
    %17 = arith.addf %16, %15 : vector<128x128xf32>
    %18 = math.log %17 : vector<128x128xf32>
    %cst_12 = arith.constant 0.000000e+00 : f32
    %19 = vector.broadcast %cst_12 : f32 to vector<128x128xf32>
    %20 = arith.maximumf %11, %19 : vector<128x128xf32>
    %21 = arith.addf %20, %18 : vector<128x128xf32>
    %22 = arith.truncf %21 : vector<128x128xf32> to vector<128x128xbf16>
    %c0_13 = arith.constant 0 : index
    %c0_14 = arith.constant 0 : index
    %23 = vector.load %arg6[%c0_13, %c0_14] : memref<128x128xbf16, #tpu.memory_space<vmem>>, vector<128x128xbf16>
    %c0_15 = arith.constant 0 : index
    %c0_16 = arith.constant 0 : index
    %24 = vector.load %arg7[%c0_15, %c0_16] : memref<1x128xf32, #tpu.memory_space<vmem>>, vector<1x128xf32>
    %cst_17 = arith.constant dense<0.000000e+00> : vector<128x128xf32>
    %25 = tpu.matmul %22, %23, %cst_17 {dimension_numbers = #tpu.dot_dimension_numbers<[1], [0], [0], [1], [0, 0, 1, 1], [], []>} : vector<128x128xbf16>, vector<128x128xbf16>, vector<128x128xf32> -> vector<128x128xf32>
    %26 = vector.broadcast %24 : vector<1x128xf32> to vector<128x128xf32>
    %27 = arith.addf %25, %26 : vector<128x128xf32>
    %28 = math.absf %27 : vector<128x128xf32>
    %cst_18 = arith.constant 0.000000e+00 : f32
    %29 = vector.broadcast %cst_18 : f32 to vector<128x128xf32>
    %30 = arith.subf %29, %28 : vector<128x128xf32>
    %31 = math.exp %30 : vector<128x128xf32>
    %cst_19 = arith.constant 1.000000e+00 : f32
    %32 = vector.broadcast %cst_19 : f32 to vector<128x128xf32>
    %33 = arith.addf %32, %31 : vector<128x128xf32>
    %34 = math.log %33 : vector<128x128xf32>
    %cst_20 = arith.constant 0.000000e+00 : f32
    %35 = vector.broadcast %cst_20 : f32 to vector<128x128xf32>
    %36 = arith.maximumf %27, %35 : vector<128x128xf32>
    %37 = arith.addf %36, %34 : vector<128x128xf32>
    %c0_21 = arith.constant 0 : index
    %c0_22 = arith.constant 0 : index
    %38 = vector.load %arg8[%c0_21, %c0_22] : memref<128x128xf32, #tpu.memory_space<vmem>>, vector<128x128xf32>
    tpu.vector_store %arg8[%c0_21, %c0_22], %37 {strides = array<i32>} : memref<128x128xf32, #tpu.memory_space<vmem>>, vector<128x128xf32>,
    return
  }
  func.func @transform_0(%arg0: i32) -> (i32, i32) {
    %c0_i32 = arith.constant 0 : i32
    %c0_i32_0 = arith.constant 0 : i32
    return %arg0, %c0_i32 : i32, i32
  }
  func.func @transform_1(%arg0: i32) -> (i32, i32) {
    %c0_i32 = arith.constant 0 : i32
    %c0_i32_0 = arith.constant 0 : i32
    return %arg0, %c0_i32 : i32, i32
  }
  func.func @transform_2(%arg0: i32) -> (i32, i32) {
    %c0_i32 = arith.constant 0 : i32
    %c0_i32_0 = arith.constant 0 : i32
    %c0_i32_1 = arith.constant 0 : i32
    return %c0_i32, %c0_i32_0 : i32, i32
  }
  func.func @transform_3(%arg0: i32) -> (i32, i32) {
    %c0_i32 = arith.constant 0 : i32
    %c0_i32_0 = arith.constant 0 : i32
    %c0_i32_1 = arith.constant 0 : i32
    return %c0_i32, %c0_i32_0 : i32, i32
  }
  func.func @transform_4(%arg0: i32) -> (i32, i32) {
    %c0_i32 = arith.constant 0 : i32
    %c0_i32_0 = arith.constant 0 : i32
    %c0_i32_1 = arith.constant 0 : i32
    return %c0_i32, %c0_i32_0 : i32, i32
  }
  func.func @transform_5(%arg0: i32) -> (i32, i32) {
    %c0_i32 = arith.constant 0 : i32
    %c0_i32_0 = arith.constant 0 : i32
    %c0_i32_1 = arith.constant 0 : i32
    return %c0_i32, %c0_i32_0 : i32, i32
  }
  func.func @transform_6(%arg0: i32) -> (i32, i32) {
    %c0_i32 = arith.constant 0 : i32
    %c0_i32_0 = arith.constant 0 : i32
    %c0_i32_1 = arith.constant 0 : i32
    return %c0_i32, %c0_i32_0 : i32, i32
  }
  func.func @transform_7(%arg0: i32) -> (i32, i32) {
    %c0_i32 = arith.constant 0 : i32
    %c0_i32_0 = arith.constant 0 : i32
    return %arg0, %c0_i32 : i32, i32
  }
}

</mosaic_0001>

<llo_original>
// kernel: tpu_custom_call.1
$region0: #{tpu_custom_call.1}
  #allocation0 [shape = 'u32[]', space=smem, size = 0x4, offset = 0x4, fixed_abs, tag = 'smem constant byte address 0x4 - core index']
  #allocation1 [shape = 'u32[144,128]{1,0:T(1,128)}', space=vmem, size = 0x12000, scoped, tag = 'internal scratch']
  %s0 = inlined_call_operand.vmem [shape: f32[256,16], index: 0, kind: input, shape index: {}]
  %s1 = inlined_call_operand.vmem [shape: f32[256,16], index: 1, kind: input, shape index: {}]
  %s2 = inlined_call_operand.vmem [shape: bf16[16,128], index: 2, kind: input, shape index: {}]
  %s3 = inlined_call_operand.vmem [shape: bf16[16,128], index: 3, kind: input, shape index: {}]
  %s4 = inlined_call_operand.vmem [shape: f32[1,128], index: 4, kind: input, shape index: {}]
  %s5 = inlined_call_operand.vmem [shape: bf16[128,128], index: 5, kind: input, shape index: {}]
  %s6 = inlined_call_operand.vmem [shape: f32[1,128], index: 6, kind: input, shape index: {}]
  %s7 = inlined_call_operand.hbm [shape: f32[256,128], index: 7, kind: output, shape index: {}]
  %s8 = sld [smem:[#allocation0]]
  $region61: #{tpu_custom_call.1} parent=0
    _
  %s10 = ssub.s32 1, %s8
  %s11 = scalar_select 0, %s10, %s8
  $region1: #{tpu_custom_call.1} parent=0
    #allocation2 [shape = 'u8[131072]{0}', space=vmem, size = 0x20000, scoped, tag = 'output window, operand 0']
    #allocation3 [shape = 's32[2]{0}', space=sflag, size = 0x8, scoped, tag = 'scoped memory for tpu_custom_call.1']
    %12 = vsyncpa [#allocation3], 0
    %s13 = scalar_lea.sflag [#allocation3], 1
    %14 = vsyncpa %s13, 0
    loop: start=0, step=1, limit=4
    $region2: #{tpu_custom_call.1} parent=1 // loop_pre_header
      _
    $region3: #{tpu_custom_call.1} parent=1 // loop_header
      %s16 = sphi 0, %s20
      %p17 = scmp.ge.s32.totalorder %s16, 4
      %s26 = sphi 0, %s28
      %s29 = sphi 0, %s26
      %s30 = sphi 0, %s29
      %s46 = sphi 0, %s30
      %s52 = sphi 0, %s54
      %s55 = sphi 0, %s52
      %s56 = sphi 0, %s55
      %s72 = sphi 0, %s56
      %s76 = sphi 0, %s76
      %s78 = sphi 0, %s76
      %s79 = sphi 0, %s78
      %s93 = sphi 0, %s79
      %s97 = sphi 0, %s97
      %s99 = sphi 0, %s97
      %s100 = sphi 0, %s99
      %s114 = sphi 0, %s100
      %s118 = sphi 0, %s118
      %s120 = sphi 0, %s118
      %s121 = sphi 0, %s120
      %s135 = sphi 0, %s121
      %s139 = sphi 0, %s139
      %s141 = sphi 0, %s139
      %s142 = sphi 0, %s141
      %s156 = sphi 0, %s142
      %s160 = sphi 0, %s160
      %s162 = sphi 0, %s160
      %s163 = sphi 0, %s162
      %s177 = sphi 0, %s163
      %s183 = sphi 0, %s185
      %s186 = sphi 0, %s183
      %s187 = sphi 0, %s186
      %s203 = sphi 0, %s187
    $region4: #{tpu_custom_call.1} parent=1 // loop_header_branch
      %19 = sbr.rel (%p17) target = $region8
    $region5: #{tpu_custom_call.1} parent=1 // loop_body
      %s21 = ssub.s32 %s16, 1
      %s22 = ssub.s32 %s16, 2
      %s23 = sadd.s32 %s16, 1
      %s24 = ssub.s32 %s16, %s23
      %p25 = scmp.eq.s32.totalorder %s24, 0
      %s27 = sadd.s32 %s26, 1
      %s28 = scalar_select %p25, %s26, %s27
      %p31 = pneg %p25
      %p32 = scmp.eq.s32.totalorder %s16, 1
      %p33 = por %p31, %p32
      %p34 = scmp.ne.s32.totalorder %s26, %s29
      %p35 = scmp.eq.s32.totalorder %s16, 0
      %p36 = por %p34, %p35
      %p37 = scmp.ne.s32.totalorder %s26, %s29
      %p38 = scmp.eq.s32.totalorder %s21, 1
      %p39 = por %p37, %p38
      %p40 = scmp.ne.s32.totalorder %s29, %s30
      %p41 = scmp.eq.s32.totalorder %s21, 0
      %p42 = por %p40, %p41
      %p43 = scmp.ne.s32.totalorder %s29, %s30
      %p44 = scmp.eq.s32.totalorder %s22, 1
      %p45 = por %p43, %p44
      %p47 = scmp.ne.s32.totalorder %s30, %s46
      %p48 = scmp.eq.s32.totalorder %s22, 0
      %p49 = por %p47, %p48
      %s50 = ssub.s32 %s16, %s23
      %p51 = scmp.eq.s32.totalorder %s50, 0
      %s53 = sadd.s32 %s52, 1
      %s54 = scalar_select %p51, %s52, %s53
      %p57 = pneg %p51
      %p58 = scmp.eq.s32.totalorder %s16, 1
      %p59 = por %p57, %p58
      %p60 = scmp.ne.s32.totalorder %s52, %s55
      %p61 = scmp.eq.s32.totalorder %s16, 0
      %p62 = por %p60, %p61
      %p63 = scmp.ne.s32.totalorder %s52, %s55
      %p64 = scmp.eq.s32.totalorder %s21, 1
      %p65 = por %p63, %p64
      %p66 = scmp.ne.s32.totalorder %s55, %s56
      %p67 = scmp.eq.s32.totalorder %s21, 0
      %p68 = por %p66, %p67
      %p69 = scmp.ne.s32.totalorder %s55, %s56
      %p70 = scmp.eq.s32.totalorder %s22, 1
      %p71 = por %p69, %p70
      %p73 = scmp.ne.s32.totalorder %s56, %s72
      %p74 = scmp.eq.s32.totalorder %s22, 0
      %p75 = por %p73, %p74
      %s77 = sadd.s32 %s76, 1
      %p80 = scmp.eq.s32.totalorder %s16, 1
      %p81 = scmp.ne.s32.totalorder %s76, %s78
      %p82 = scmp.eq.s32.totalorder %s16, 0
      %p83 = por %p81, %p82
      %p84 = scmp.ne.s32.totalorder %s76, %s78
      %p85 = scmp.eq.s32.totalorder %s21, 1
      %p86 = por %p84, %p85
      %p87 = scmp.ne.s32.totalorder %s78, %s79
      %p88 = scmp.eq.s32.totalorder %s21, 0
      %p89 = por %p87, %p88
      %p90 = scmp.ne.s32.totalorder %s78, %s79
      %p91 = scmp.eq.s32.totalorder %s22, 1
      %p92 = por %p90, %p91
      %p94 = scmp.ne.s32.totalorder %s79, %s93
      %p95 = scmp.eq.s32.totalorder %s22, 0
      %p96 = por %p94, %p95
      %s98 = sadd.s32 %s97, 1
      %p101 = scmp.eq.s32.totalorder %s16, 1
      %p102 = scmp.ne.s32.totalorder %s97, %s99
      %p103 = scmp.eq.s32.totalorder %s16, 0
      %p104 = por %p102, %p103
      %p105 = scmp.ne.s32.totalorder %s97, %s99
      %p106 = scmp.eq.s32.totalorder %s21, 1
      %p107 = por %p105, %p106
      %p108 = scmp.ne.s32.totalorder %s99, %s100
      %p109 = scmp.eq.s32.totalorder %s21, 0
      %p110 = por %p108, %p109
      %p111 = scmp.ne.s32.totalorder %s99, %s100
      %p112 = scmp.eq.s32.totalorder %s22, 1
      %p113 = por %p111, %p112
      %p115 = scmp.ne.s32.totalorder %s100, %s114
      %p116 = scmp.eq.s32.totalorder %s22, 0
      %p117 = por %p115, %p116
      %s119 = sadd.s32 %s118, 1
      %p122 = scmp.eq.s32.totalorder %s16, 1
      %p123 = scmp.ne.s32.totalorder %s118, %s120
      %p124 = scmp.eq.s32.totalorder %s16, 0
      %p125 = por %p123, %p124
      %p126 = scmp.ne.s32.totalorder %s118, %s120
      %p127 = scmp.eq.s32.totalorder %s21, 1
      %p128 = por %p126, %p127
      %p129 = scmp.ne.s32.totalorder %s120, %s121
      %p130 = scmp.eq.s32.totalorder %s21, 0
      %p131 = por %p129, %p130
      %p132 = scmp.ne.s32.totalorder %s120, %s121
      %p133 = scmp.eq.s32.totalorder %s22, 1
      %p134 = por %p132, %p133
      %p136 = scmp.ne.s32.totalorder %s121, %s135
      %p137 = scmp.eq.s32.totalorder %s22, 0
      %p138 = por %p136, %p137
      %s140 = sadd.s32 %s139, 1
      %p143 = scmp.eq.s32.totalorder %s16, 1
      %p144 = scmp.ne.s32.totalorder %s139, %s141
      %p145 = scmp.eq.s32.totalorder %s16, 0
      %p146 = por %p144, %p145
      %p147 = scmp.ne.s32.totalorder %s139, %s141
      %p148 = scmp.eq.s32.totalorder %s21, 1
      %p149 = por %p147, %p148
      %p150 = scmp.ne.s32.totalorder %s141, %s142
      %p151 = scmp.eq.s32.totalorder %s21, 0
      %p152 = por %p150, %p151
      %p153 = scmp.ne.s32.totalorder %s141, %s142
      %p154 = scmp.eq.s32.totalorder %s22, 1
      %p155 = por %p153, %p154
      %p157 = scmp.ne.s32.totalorder %s142, %s156
      %p158 = scmp.eq.s32.totalorder %s22, 0
      %p159 = por %p157, %p158
      %s161 = sadd.s32 %s160, 1
      %p164 = scmp.eq.s32.totalorder %s16, 1
      %p165 = scmp.ne.s32.totalorder %s160, %s162
      %p166 = scmp.eq.s32.totalorder %s16, 0
      %p167 = por %p165, %p166
      %p168 = scmp.ne.s32.totalorder %s160, %s162
      %p169 = scmp.eq.s32.totalorder %s21, 1
      %p170 = por %p168, %p169
      %p171 = scmp.ne.s32.totalorder %s162, %s163
      %p172 = scmp.eq.s32.totalorder %s21, 0
      %p173 = por %p171, %p172
      %p174 = scmp.ne.s32.totalorder %s162, %s163
      %p175 = scmp.eq.s32.totalorder %s22, 1
      %p176 = por %p174, %p175
      %p178 = scmp.ne.s32.totalorder %s163, %s177
      %p179 = scmp.eq.s32.totalorder %s22, 0
      %p180 = por %p178, %p179
      %s181 = ssub.s32 %s16, %s23
      %p182 = scmp.eq.s32.totalorder %s181, 0
      %s184 = sadd.s32 %s183, 1
      %s185 = scalar_select %p182, %s183, %s184
      %p188 = pneg %p182
      %p189 = scmp.eq.s32.totalorder %s16, 1
      %p190 = por %p188, %p189
      %p191 = scmp.ne.s32.totalorder %s183, %s186
      %p192 = scmp.eq.s32.totalorder %s16, 0
      %p193 = por %p191, %p192
      %p194 = scmp.ne.s32.totalorder %s183, %s186
      %p195 = scmp.eq.s32.totalorder %s21, 1
      %p196 = por %p194, %p195
      %p197 = scmp.ne.s32.totalorder %s186, %s187
      %p198 = scmp.eq.s32.totalorder %s21, 0
      %p199 = por %p197, %p198
      %p200 = scmp.ne.s32.totalorder %s186, %s187
      %p201 = scmp.eq.s32.totalorder %s22, 1
      %p202 = por %p200, %p201
      %p204 = scmp.ne.s32.totalorder %s187, %s203
      %p205 = scmp.eq.s32.totalorder %s22, 0
      %p206 = por %p204, %p205
      %p207 = scmp.le.s32.totalorder 1, %s16
      %p208 = scmp.lt.s32.totalorder %s16, 3
      %p209 = pnand %p207, %p208
      %p210 = pneg %p209
      // Predicated region
      $region9: #{tpu_custom_call.1} parent=5 // pred_check
        _
      $region10: #{tpu_custom_call.1} parent=5 // pred_check_branch
        %212 = sbr.rel (%p209) target = $region12
      $region11: #{tpu_custom_call.1} parent=5 // pred_region
        %s213 = ssub.s32 %s16, 1
        // Predicated region
        $region13: #{tpu_custom_call.1} parent=11 // pred_check
          %p214 = pneg %p89
        $region14: #{tpu_custom_call.1} parent=11 // pred_check_branch
          %216 = sbr.rel (%p214) target = $region16
        $region15: #{tpu_custom_call.1} parent=11 // pred_region
          _
        $region16: #{tpu_custom_call.1} parent=11 // pred_fallthru
          _
        // Predicated region
        $region17: #{tpu_custom_call.1} parent=11 // pred_check
          %p217 = pneg %p110
        $region18: #{tpu_custom_call.1} parent=11 // pred_check_branch
          %219 = sbr.rel (%p217) target = $region20
        $region19: #{tpu_custom_call.1} parent=11 // pred_region
          _
        $region20: #{tpu_custom_call.1} parent=11 // pred_fallthru
          _
        // Predicated region
        $region21: #{tpu_custom_call.1} parent=11 // pred_check
          %p220 = pneg %p131
        $region22: #{tpu_custom_call.1} parent=11 // pred_check_branch
          %222 = sbr.rel (%p220) target = $region24
        $region23: #{tpu_custom_call.1} parent=11 // pred_region
          _
        $region24: #{tpu_custom_call.1} parent=11 // pred_fallthru
          _
        // Predicated region
        $region25: #{tpu_custom_call.1} parent=11 // pred_check
          %p223 = pneg %p152
        $region26: #{tpu_custom_call.1} parent=11 // pred_check_branch
          %225 = sbr.rel (%p223) target = $region28
        $region27: #{tpu_custom_call.1} parent=11 // pred_region
          _
        $region28: #{tpu_custom_call.1} parent=11 // pred_fallthru
          _
        // Predicated region
        $region29: #{tpu_custom_call.1} parent=11 // pred_check
          %p226 = pneg %p173
        $region30: #{tpu_custom_call.1} parent=11 // pred_check_branch
          %228 = sbr.rel (%p226) target = $region32
        $region31: #{tpu_custom_call.1} parent=11 // pred_region
          _
        $region32: #{tpu_custom_call.1} parent=11 // pred_fallthru
          _
      $region12: #{tpu_custom_call.1} parent=5 // pred_fallthru
        _
      %p229 = scmp.lt.s32.totalorder %s16, 2
      // Predicated region
      $region33: #{tpu_custom_call.1} parent=5 // pred_check
        %p230 = pneg %p229
      $region34: #{tpu_custom_call.1} parent=5 // pred_check_branch
        %232 = sbr.rel (%p230) target = $region36
      $region35: #{tpu_custom_call.1} parent=5 // pred_region
        // Predicated region
        $region37: #{tpu_custom_call.1} parent=35 // pred_check
          %p233 = pneg %p36
        $region38: #{tpu_custom_call.1} parent=35 // pred_check_branch
          %235 = sbr.rel (%p233) target = $region40
        $region39: #{tpu_custom_call.1} parent=35 // pred_region
          %s236 = smul.u32 16, %s16
          %p237 = scmp.lt.s32.totalorder %s236, 31
          %s238 = scalar_select %p237, %s236, 31
          %s239 = smul.addr %s238, 8
          %s240 = scalar_lea.vmem %s0, %s239
          %s241 = smul.u32 16, %s16
        $region40: #{tpu_custom_call.1} parent=35 // pred_fallthru
          _
        // Predicated region
        $region41: #{tpu_custom_call.1} parent=35 // pred_check
          %p242 = pneg %p62
        $region42: #{tpu_custom_call.1} parent=35 // pred_check_branch
          %244 = sbr.rel (%p242) target = $region44
        $region43: #{tpu_custom_call.1} parent=35 // pred_region
          %s245 = smul.u32 16, %s16
          %p246 = scmp.lt.s32.totalorder %s245, 31
          %s247 = scalar_select %p246, %s245, 31
          %s248 = smul.addr %s247, 8
          %s249 = scalar_lea.vmem %s1, %s248
          %s250 = smul.u32 16, %s16
        $region44: #{tpu_custom_call.1} parent=35 // pred_fallthru
          _
      $region36: #{tpu_custom_call.1} parent=5 // pred_fallthru
        _
      %p251 = scmp.le.s32.totalorder 1, %s16
      %p252 = scmp.lt.s32.totalorder %s16, 3
      %p253 = pnand %p251, %p252
      %p254 = pneg %p253
      // Predicated region
      $region45: #{tpu_custom_call.1} parent=5 // pred_check
        _
      $region46: #{tpu_custom_call.1} parent=5 // pred_check_branch
        %256 = sbr.rel (%p253) target = $region48
      $region47: #{tpu_custom_call.1} parent=5 // pred_region
        %s257 = ssub.s32 %s16, 1
        %s258 = smul.u32 16, %s21
        %p259 = scmp.lt.s32.totalorder %s258, 31
        %s260 = scalar_select %p259, %s258, 31
        %s261 = smul.addr %s260, 8
        %s262 = scalar_lea.vmem %s0, %s261
        %p263 = pneg %p42
        %p264 = pneg %p39
        %s265 = smul.u32 16, %s21
        %p266 = scmp.lt.s32.totalorder %s265, 31
        %s267 = scalar_select %p266, %s265, 31
        %s268 = smul.addr %s267, 8
        %s269 = scalar_lea.vmem %s1, %s268
        %p270 = pneg %p68
        %p271 = pneg %p65
        %p272 = pneg %p89
        %p273 = pneg %p86
        %p274 = pneg %p110
        %p275 = pneg %p107
        %p276 = pneg %p131
        %p277 = pneg %p128
        %p278 = pneg %p152
        %p279 = pneg %p149
        %p280 = pneg %p173
        %p281 = pneg %p170
        %p282 = pneg %p199
        %p283 = pneg %p196
        %s284 = sand.u32 %s186, 1
        %s285 = scalar_lea.sflag [#allocation3], %s284
        %s286 = sand.u32 %s186, 1
        %s287 = smul.addr %s286, 128
        %s288 = scalar_lea.vmem [#allocation2], %s287
        %s289 = smul.u32 16, %s21
        %p290 = scmp.lt.s32.totalorder %s289, 31
        %s291 = scalar_select %p290, %s289, 31
        %s292 = smul.addr %s291, 8
        %s293 = scalar_lea.vmem %s0, %s292
        %s294 = smul.u32 16, %s21
        %s295 = smul.u32 16, %s21
        %p296 = scmp.lt.s32.totalorder %s295, 31
        %s297 = scalar_select %p296, %s295, 31
        %s298 = smul.addr %s297, 8
        %s299 = scalar_lea.vmem %s1, %s298
        %s300 = smul.u32 16, %s21
        %s301 = smul.u32 16, %s21
        %v303 = vld [vmem:[%s293] sm:$0xff]
        %v304 = vld [vmem:[%s293 + $0x8] sm:$0xff]
        %v305 = vld [vmem:[%s293 + $0x10] sm:$0xff]
        %v306 = vld [vmem:[%s293 + $0x18] sm:$0xff]
        %v307 = vld [vmem:[%s293 + $0x20] sm:$0xff]
        %v308 = vld [vmem:[%s293 + $0x28] sm:$0xff]
        %v309 = vld [vmem:[%s293 + $0x30] sm:$0xff]
        %v310 = vld [vmem:[%s293 + $0x38] sm:$0xff]
        %v311 = vld [vmem:[%s293 + $0x40] sm:$0xff]
        %v312 = vld [vmem:[%s293 + $0x48] sm:$0xff]
        %v313 = vld [vmem:[%s293 + $0x50] sm:$0xff]
        %v314 = vld [vmem:[%s293 + $0x58] sm:$0xff]
        %v315 = vld [vmem:[%s293 + $0x60] sm:$0xff]
        %v316 = vld [vmem:[%s293 + $0x68] sm:$0xff]
        %v317 = vld [vmem:[%s293 + $0x70] sm:$0xff]
        %v318 = vld [vmem:[%s293 + $0x78] sm:$0xff]
        %v319 = vpack.c.bf16 %v304, %v303
        %v320 = vpack.c.bf16 %v306, %v305
        %v321 = vpack.c.bf16 %v308, %v307
        %v322 = vpack.c.bf16 %v310, %v309
        %v323 = vpack.c.bf16 %v312, %v311
        %v324 = vpack.c.bf16 %v314, %v313
        %v325 = vpack.c.bf16 %v316, %v315
        %v326 = vpack.c.bf16 %v318, %v317
        %v327 = vld [vmem:[%s2] sm:$0xf]
        %v328 = vld [vmem:[%s2 + $0x4] sm:$0xf]
        %v329 = vld [vmem:[%s299] sm:$0xff]
        %v330 = vld [vmem:[%s299 + $0x8] sm:$0xff]
        %v331 = vld [vmem:[%s299 + $0x10] sm:$0xff]
        %v332 = vld [vmem:[%s299 + $0x18] sm:$0xff]
        %v333 = vld [vmem:[%s299 + $0x20] sm:$0xff]
        %v334 = vld [vmem:[%s299 + $0x28] sm:$0xff]
        %v335 = vld [vmem:[%s299 + $0x30] sm:$0xff]
        %v336 = vld [vmem:[%s299 + $0x38] sm:$0xff]
        %v337 = vld [vmem:[%s299 + $0x40] sm:$0xff]
        %v338 = vld [vmem:[%s299 + $0x48] sm:$0xff]
        %v339 = vld [vmem:[%s299 + $0x50] sm:$0xff]
        %v340 = vld [vmem:[%s299 + $0x58] sm:$0xff]
        %v341 = vld [vmem:[%s299 + $0x60] sm:$0xff]
        %v342 = vld [vmem:[%s299 + $0x68] sm:$0xff]
        %v343 = vld [vmem:[%s299 + $0x70] sm:$0xff]
        %v344 = vld [vmem:[%s299 + $0x78] sm:$0xff]
        %v345 = vpack.c.bf16 %v330, %v329
        %v346 = vpack.c.bf16 %v332, %v331
        %v347 = vpack.c.bf16 %v334, %v333
        %v348 = vpack.c.bf16 %v336, %v335
        %v349 = vpack.c.bf16 %v338, %v337
        %v350 = vpack.c.bf16 %v340, %v339
        %v351 = vpack.c.bf16 %v342, %v341
        %v352 = vpack.c.bf16 %v344, %v343
        %v353 = vld [vmem:[%s3] sm:$0xf]
        %v354 = vld [vmem:[%s3 + $0x4] sm:$0xf]
        %v357 = vunpack.c.l.b16 %v353
        %v358 = vunpack.c.l.b16 %v354
        %v359 = vpack.c.b16 %v358, %v357
        %vm361 = vcmask 130048
        %v363 = vsel %vm361, %v345, 0
        %v366 = vsel %vm361, %v346, 0
        %v369 = vsel %vm361, %v347, 0
        %v372 = vsel %vm361, %v348, 0
        %v375 = vsel %vm361, %v349, 0
        %v378 = vsel %vm361, %v350, 0
        %v381 = vsel %vm361, %v351, 0
        %v384 = vsel %vm361, %v352, 0
        %386 = vmatprep.subr.bf16.mxu0 0
        %387 = vmatpush1.bf16.msra.mxu0 %v359
        %388 = vmatprep.subr.bf16.mxu0 0
        %389 = vmatpush1.bf16.msra.mxu0 0
        %390 = vmatprep.subr.bf16.mxu0 0
        %391 = vmatpush1.bf16.msra.mxu0 0
        %392 = vmatprep.subr.bf16.mxu0 0
        %393 = vmatpush1.bf16.msra.mxu0 0
        %394 = vmatprep.subr.bf16.mxu0 0
        %395 = vmatpush1.bf16.msra.mxu0 0
        %396 = vmatprep.subr.bf16.mxu0 0
        %397 = vmatpush1.bf16.msra.mxu0 0
        %398 = vmatprep.subr.bf16.mxu0 0
        %399 = vmatpush1.bf16.msra.mxu0 0
        %400 = vmatprep.subr.bf16.mxu0 0
        %401 = vmatpush1.bf16.msra.mxu0 0
        %402 = vmatprep.subr.bf16.mxu0 0
        %403 = vmatpush1.bf16.msra.mxu0 0
        %404 = vmatprep.subr.bf16.mxu0 0
        %405 = vmatpush1.bf16.msra.mxu0 0
        %406 = vmatprep.subr.bf16.mxu0 0
        %407 = vmatpush1.bf16.msra.mxu0 0
        %408 = vmatprep.subr.bf16.mxu0 0
        %409 = vmatpush1.bf16.msra.mxu0 0
        %410 = vmatprep.subr.bf16.mxu0 0
        %411 = vmatpush1.bf16.msra.mxu0 0
        %412 = vmatprep.subr.bf16.mxu0 0
        %413 = vmatpush1.bf16.msra.mxu0 0
        %414 = vmatprep.subr.bf16.mxu0 0
        %415 = vmatpush1.bf16.msra.mxu0 0
        %416 = vmatprep.subr.bf16.mxu0 0
        %417 = vmatpush1.bf16.msra.mxu0 0
        %418 = vmatprep.mubr.bf16.mxu0 0
        %419 = vmatmul.mubr.bf16.gmra.mrb[0].mxu0 %v363
        %v420 = vpop.f32.mrb[0].mxu0
        %v421 = vadd.f32 0.0, %v420
        %v422 = vpop.f32.mrb[0].mxu0
        %v423 = vpop.f32.mrb[0].mxu0
        %v424 = vadd.f32 0.0, %v423
        %v425 = vpop.f32.mrb[0].mxu0
        %426 = vmatprep.mubr.bf16.mxu0 0
        %427 = vmatmul.mubr.bf16.gmra.mrb[0].mxu0 %v366
        %v428 = vpop.f32.mrb[0].mxu0
        %v429 = vadd.f32 0.0, %v428
        %v430 = vpop.f32.mrb[0].mxu0
        %v431 = vpop.f32.mrb[0].mxu0
        %v432 = vadd.f32 0.0, %v431
        %v433 = vpop.f32.mrb[0].mxu0
        %434 = vmatprep.mubr.bf16.mxu0 0
        %435 = vmatmul.mubr.bf16.gmra.mrb[0].mxu0 %v369
        %v436 = vpop.f32.mrb[0].mxu0
        %v437 = vadd.f32 0.0, %v436
        %v438 = vpop.f32.mrb[0].mxu0
        %v439 = vpop.f32.mrb[0].mxu0
        %v440 = vadd.f32 0.0, %v439
        %v441 = vpop.f32.mrb[0].mxu0
        %442 = vmatprep.mubr.bf16.mxu0 0
        %443 = vmatmul.mubr.bf16.gmra.mrb[0].mxu0 %v372
        %v444 = vpop.f32.mrb[0].mxu0
        %v445 = vadd.f32 0.0, %v444
        %v446 = vpop.f32.mrb[0].mxu0
        %v447 = vpop.f32.mrb[0].mxu0
        %v448 = vadd.f32 0.0, %v447
        %v449 = vpop.f32.mrb[0].mxu0
        %450 = vmatprep.mubr.bf16.mxu0 0
        %451 = vmatmul.mubr.bf16.gmra.mrb[0].mxu0 %v375
        %v452 = vpop.f32.mrb[0].mxu0
        %v453 = vadd.f32 0.0, %v452
        %v454 = vpop.f32.mrb[0].mxu0
        %v455 = vpop.f32.mrb[0].mxu0
        %v456 = vadd.f32 0.0, %v455
        %v457 = vpop.f32.mrb[0].mxu0
        %458 = vmatprep.mubr.bf16.mxu0 0
        %459 = vmatmul.mubr.bf16.gmra.mrb[0].mxu0 %v378
        %v460 = vpop.f32.mrb[0].mxu0
        %v461 = vadd.f32 0.0, %v460
        %v462 = vpop.f32.mrb[0].mxu0
        %v463 = vpop.f32.mrb[0].mxu0
        %v464 = vadd.f32 0.0, %v463
        %v465 = vpop.f32.mrb[0].mxu0
        %466 = vmatprep.mubr.bf16.mxu0 0
        %467 = vmatmul.mubr.bf16.gmra.mrb[0].mxu0 %v381
        %v468 = vpop.f32.mrb[0].mxu0
        %v469 = vadd.f32 0.0, %v468
        %v470 = vpop.f32.mrb[0].mxu0
        %v471 = vpop.f32.mrb[0].mxu0
        %v472 = vadd.f32 0.0, %v471
        %v473 = vpop.f32.mrb[0].mxu0
        %474 = vmatprep.mubr.bf16.mxu0 0
        %475 = vmatmul.mubr.bf16.gmra.mrb[0].mxu0 %v384
        %v476 = vpop.f32.mrb[0].mxu0
        %v477 = vadd.f32 0.0, %v476
        %v478 = vpop.f32.mrb[0].mxu0
        %v479 = vpop.f32.mrb[0].mxu0
        %v480 = vadd.f32 0.0, %v479
        %v481 = vpop.f32.mrb[0].mxu0
        %482 = vdwg.mxu0
        %v485 = vunpack.c.l.b16 %v327
        %v486 = vunpack.c.l.b16 %v328
        %v487 = vpack.c.b16 %v486, %v485
        %v490 = vsel %vm361, %v319, 0
        %v493 = vsel %vm361, %v320, 0
        %v496 = vsel %vm361, %v321, 0
        %v499 = vsel %vm361, %v322, 0
        %v502 = vsel %vm361, %v323, 0
        %v505 = vsel %vm361, %v324, 0
        %v508 = vsel %vm361, %v325, 0
        %v511 = vsel %vm361, %v326, 0
        %513 = vmatprep.subr.bf16.mxu0 0
        %514 = vmatpush1.bf16.msra.mxu0 %v487
        %515 = vmatprep.subr.bf16.mxu0 0
        %516 = vmatpush1.bf16.msra.mxu0 0
        %517 = vmatprep.subr.bf16.mxu0 0
        %518 = vmatpush1.bf16.msra.mxu0 0
        %519 = vmatprep.subr.bf16.mxu0 0
        %520 = vmatpush1.bf16.msra.mxu0 0
        %521 = vmatprep.subr.bf16.mxu0 0
        %522 = vmatpush1.bf16.msra.mxu0 0
        %523 = vmatprep.subr.bf16.mxu0 0
        %524 = vmatpush1.bf16.msra.mxu0 0
        %525 = vmatprep.subr.bf16.mxu0 0
        %526 = vmatpush1.bf16.msra.mxu0 0
        %527 = vmatprep.subr.bf16.mxu0 0
        %528 = vmatpush1.bf16.msra.mxu0 0
        %529 = vmatprep.subr.bf16.mxu0 0
        %530 = vmatpush1.bf16.msra.mxu0 0
        %531 = vmatprep.subr.bf16.mxu0 0
        %532 = vmatpush1.bf16.msra.mxu0 0
        %533 = vmatprep.subr.bf16.mxu0 0
        %534 = vmatpush1.bf16.msra.mxu0 0
        %535 = vmatprep.subr.bf16.mxu0 0
        %536 = vmatpush1.bf16.msra.mxu0 0
        %537 = vmatprep.subr.bf16.mxu0 0
        %538 = vmatpush1.bf16.msra.mxu0 0
        %539 = vmatprep.subr.bf16.mxu0 0
        %540 = vmatpush1.bf16.msra.mxu0 0
        %541 = vmatprep.subr.bf16.mxu0 0
        %542 = vmatpush1.bf16.msra.mxu0 0
        %543 = vmatprep.subr.bf16.mxu0 0
        %544 = vmatpush1.bf16.msra.mxu0 0
        %545 = vmatprep.mubr.bf16.mxu0 0
        %546 = vmatmul.mubr.bf16.gmra.mrb[0].mxu0 %v490
        %v547 = vpop.f32.mrb[0].mxu0
        %v548 = vadd.f32 %v421, %v547
        %v549 = vpop.f32.mrb[0].mxu0
        %v550 = vpop.f32.mrb[0].mxu0
        %v551 = vadd.f32 %v424, %v550
        %v552 = vpop.f32.mrb[0].mxu0
        %553 = vmatprep.mubr.bf16.mxu0 0
        %554 = vmatmul.mubr.bf16.gmra.mrb[0].mxu0 %v493
        %v555 = vpop.f32.mrb[0].mxu0
        %v556 = vadd.f32 %v429, %v555
        %v557 = vpop.f32.mrb[0].mxu0
        %v558 = vpop.f32.mrb[0].mxu0
        %v559 = vadd.f32 %v432, %v558
        %v560 = vpop.f32.mrb[0].mxu0
        %561 = vmatprep.mubr.bf16.mxu0 0
        %562 = vmatmul.mubr.bf16.gmra.mrb[0].mxu0 %v496
        %v563 = vpop.f32.mrb[0].mxu0
        %v564 = vadd.f32 %v437, %v563
        %v565 = vpop.f32.mrb[0].mxu0
        %v566 = vpop.f32.mrb[0].mxu0
        %v567 = vadd.f32 %v440, %v566
        %v568 = vpop.f32.mrb[0].mxu0
        %569 = vmatprep.mubr.bf16.mxu0 0
        %570 = vmatmul.mubr.bf16.gmra.mrb[0].mxu0 %v499
        %v571 = vpop.f32.mrb[0].mxu0
        %v572 = vadd.f32 %v445, %v571
        %v573 = vpop.f32.mrb[0].mxu0
        %v574 = vpop.f32.mrb[0].mxu0
        %v575 = vadd.f32 %v448, %v574
        %v576 = vpop.f32.mrb[0].mxu0
        %577 = vmatprep.mubr.bf16.mxu0 0
        %578 = vmatmul.mubr.bf16.gmra.mrb[0].mxu0 %v502
        %v579 = vpop.f32.mrb[0].mxu0
        %v580 = vadd.f32 %v453, %v579
        %v581 = vpop.f32.mrb[0].mxu0
        %v582 = vpop.f32.mrb[0].mxu0
        %v583 = vadd.f32 %v456, %v582
        %v584 = vpop.f32.mrb[0].mxu0
        %585 = vmatprep.mubr.bf16.mxu0 0
        %586 = vmatmul.mubr.bf16.gmra.mrb[0].mxu0 %v505
        %v587 = vpop.f32.mrb[0].mxu0
        %v588 = vadd.f32 %v461, %v587
        %v589 = vpop.f32.mrb[0].mxu0
        %v590 = vpop.f32.mrb[0].mxu0
        %v591 = vadd.f32 %v464, %v590
        %v592 = vpop.f32.mrb[0].mxu0
        %593 = vmatprep.mubr.bf16.mxu0 0
        %594 = vmatmul.mubr.bf16.gmra.mrb[0].mxu0 %v508
        %v595 = vpop.f32.mrb[0].mxu0
        %v596 = vadd.f32 %v469, %v595
        %v597 = vpop.f32.mrb[0].mxu0
        %v598 = vpop.f32.mrb[0].mxu0
        %v599 = vadd.f32 %v472, %v598
        %v600 = vpop.f32.mrb[0].mxu0
        %601 = vmatprep.mubr.bf16.mxu0 0
        %602 = vmatmul.mubr.bf16.gmra.mrb[0].mxu0 %v511
        %v603 = vpop.f32.mrb[0].mxu0
        %v604 = vadd.f32 %v477, %v603
        %v605 = vpop.f32.mrb[0].mxu0
        %v606 = vpop.f32.mrb[0].mxu0
        %v607 = vadd.f32 %v480, %v606
        %v608 = vpop.f32.mrb[0].mxu0
        %609 = vdwg.mxu0
        %v610 = vld [vmem:[%s4] sm:$0x1]
        %v612 = vlaneseq
        %v613 = vshrl.u32 %v612, 7
        %v614 = vsub.s32 0, %v613
        %v615 = vrot.slane %v610, %v614
        %v617 = vadd.f32 %v548, %v615
        %v618 = vadd.f32 %v551, %v615
        %v619 = vadd.f32 %v556, %v615
        %v620 = vadd.f32 %v559, %v615
        %v621 = vadd.f32 %v564, %v615
        %v622 = vadd.f32 %v567, %v615
        %v623 = vadd.f32 %v572, %v615
        %v624 = vadd.f32 %v575, %v615
        %v625 = vadd.f32 %v580, %v615
        %v626 = vadd.f32 %v583, %v615
        %v627 = vadd.f32 %v588, %v615
        %v628 = vadd.f32 %v591, %v615
        %v629 = vadd.f32 %v596, %v615
        %v630 = vadd.f32 %v599, %v615
        %v631 = vadd.f32 %v604, %v615
        %v632 = vadd.f32 %v607, %v615
        %v633 = vand.u32 2147483647, %v617
        %v634 = vand.u32 2147483647, %v618
        %v635 = vand.u32 2147483647, %v619
        %v636 = vand.u32 2147483647, %v620
        %v637 = vand.u32 2147483647, %v621
        %v638 = vand.u32 2147483647, %v622
        %v639 = vand.u32 2147483647, %v623
        %v640 = vand.u32 2147483647, %v624
        %v641 = vand.u32 2147483647, %v625
        %v642 = vand.u32 2147483647, %v626
        %v643 = vand.u32 2147483647, %v627
        %v644 = vand.u32 2147483647, %v628
        %v645 = vand.u32 2147483647, %v629
        %v646 = vand.u32 2147483647, %v630
        %v647 = vand.u32 2147483647, %v631
        %v648 = vand.u32 2147483647, %v632
        %v649 = vsub.f32 0.0, %v633
        %v650 = vsub.f32 0.0, %v634
        %v651 = vsub.f32 0.0, %v635
        %v652 = vsub.f32 0.0, %v636
        %v653 = vsub.f32 0.0, %v637
        %v654 = vsub.f32 0.0, %v638
        %v655 = vsub.f32 0.0, %v639
        %v656 = vsub.f32 0.0, %v640
        %v657 = vsub.f32 0.0, %v641
        %v658 = vsub.f32 0.0, %v642
        %v659 = vsub.f32 0.0, %v643
        %v660 = vsub.f32 0.0, %v644
        %v661 = vsub.f32 0.0, %v645
        %v662 = vsub.f32 0.0, %v646
        %v663 = vsub.f32 0.0, %v647
        %v664 = vsub.f32 0.0, %v648
        %v665 = vmul.f32 %v649, 1.442695
        %v666 = vpow.pop %v665
        %v667 = vmul.f32 %v650, 1.442695
        %v668 = vpow.pop %v667
        %v669 = vmul.f32 %v651, 1.442695
        %v670 = vpow.pop %v669
        %v671 = vmul.f32 %v652, 1.442695
        %v672 = vpow.pop %v671
        %v673 = vmul.f32 %v653, 1.442695
        %v674 = vpow.pop %v673
        %v675 = vmul.f32 %v654, 1.442695
        %v676 = vpow.pop %v675
        %v677 = vmul.f32 %v655, 1.442695
        %v678 = vpow.pop %v677
        %v679 = vmul.f32 %v656, 1.442695
        %v680 = vpow.pop %v679
        %v681 = vmul.f32 %v657, 1.442695
        %v682 = vpow.pop %v681
        %v683 = vmul.f32 %v658, 1.442695
        %v684 = vpow.pop %v683
        %v685 = vmul.f32 %v659, 1.442695
        %v686 = vpow.pop %v685
        %v687 = vmul.f32 %v660, 1.442695
        %v688 = vpow.pop %v687
        %v689 = vmul.f32 %v661, 1.442695
        %v690 = vpow.pop %v689
        %v691 = vmul.f32 %v662, 1.442695
        %v692 = vpow.pop %v691
        %v693 = vmul.f32 %v663, 1.442695
        %v694 = vpow.pop %v693
        %v695 = vmul.f32 %v664, 1.442695
        %v696 = vpow.pop %v695
        %v697 = vadd.f32 %v666, 1.0
        %v698 = vlog2.pop %v697
        %v699 = vmul.f32 %v698, 0.6931472
        %v700 = vmul.f32 -0.5, %v666
        %v701 = vadd.f32 %v700, 1.0
        %v702 = vmul.f32 %v701, %v666
        %v703 = vand.u32 2147483647, %v666
        %vm704 = vcmp.lt.f32.partialorder %v703, 0.0004427343
        %v705 = vsel %vm704, %v702, %v699
        %v706 = vadd.f32 %v668, 1.0
        %v707 = vlog2.pop %v706
        %v708 = vmul.f32 %v707, 0.6931472
        %v709 = vmul.f32 -0.5, %v668
        %v710 = vadd.f32 %v709, 1.0
        %v711 = vmul.f32 %v710, %v668
        %v712 = vand.u32 2147483647, %v668
        %vm713 = vcmp.lt.f32.partialorder %v712, 0.0004427343
        %v714 = vsel %vm713, %v711, %v708
        %v715 = vadd.f32 %v670, 1.0
        %v716 = vlog2.pop %v715
        %v717 = vmul.f32 %v716, 0.6931472
        %v718 = vmul.f32 -0.5, %v670
        %v719 = vadd.f32 %v718, 1.0
        %v720 = vmul.f32 %v719, %v670
        %v721 = vand.u32 2147483647, %v670
        %vm722 = vcmp.lt.f32.partialorder %v721, 0.0004427343
        %v723 = vsel %vm722, %v720, %v717
        %v724 = vadd.f32 %v672, 1.0
        %v725 = vlog2.pop %v724
        %v726 = vmul.f32 %v725, 0.6931472
        %v727 = vmul.f32 -0.5, %v672
        %v728 = vadd.f32 %v727, 1.0
        %v729 = vmul.f32 %v728, %v672
        %v730 = vand.u32 2147483647, %v672
        %vm731 = vcmp.lt.f32.partialorder %v730, 0.0004427343
        %v732 = vsel %vm731, %v729, %v726
        %v733 = vadd.f32 %v674, 1.0
        %v734 = vlog2.pop %v733
        %v735 = vmul.f32 %v734, 0.6931472
        %v736 = vmul.f32 -0.5, %v674
        %v737 = vadd.f32 %v736, 1.0
        %v738 = vmul.f32 %v737, %v674
        %v739 = vand.u32 2147483647, %v674
        %vm740 = vcmp.lt.f32.partialorder %v739, 0.0004427343
        %v741 = vsel %vm740, %v738, %v735
        %v742 = vadd.f32 %v676, 1.0
        %v743 = vlog2.pop %v742
        %v744 = vmul.f32 %v743, 0.6931472
        %v745 = vmul.f32 -0.5, %v676
        %v746 = vadd.f32 %v745, 1.0
        %v747 = vmul.f32 %v746, %v676
        %v748 = vand.u32 2147483647, %v676
        %vm749 = vcmp.lt.f32.partialorder %v748, 0.0004427343
        %v750 = vsel %vm749, %v747, %v744
        %v751 = vadd.f32 %v678, 1.0
        %v752 = vlog2.pop %v751
        %v753 = vmul.f32 %v752, 0.6931472
        %v754 = vmul.f32 -0.5, %v678
        %v755 = vadd.f32 %v754, 1.0
        %v756 = vmul.f32 %v755, %v678
        %v757 = vand.u32 2147483647, %v678
        %vm758 = vcmp.lt.f32.partialorder %v757, 0.0004427343
        %v759 = vsel %vm758, %v756, %v753
        %v760 = vadd.f32 %v680, 1.0
        %v761 = vlog2.pop %v760
        %v762 = vmul.f32 %v761, 0.6931472
        %v763 = vmul.f32 -0.5, %v680
        %v764 = vadd.f32 %v763, 1.0
        %v765 = vmul.f32 %v764, %v680
        %v766 = vand.u32 2147483647, %v680
        %vm767 = vcmp.lt.f32.partialorder %v766, 0.0004427343
        %v768 = vsel %vm767, %v765, %v762
        %v769 = vadd.f32 %v682, 1.0
        %v770 = vlog2.pop %v769
        %v771 = vmul.f32 %v770, 0.6931472
        %v772 = vmul.f32 -0.5, %v682
        %v773 = vadd.f32 %v772, 1.0
        %v774 = vmul.f32 %v773, %v682
        %v775 = vand.u32 2147483647, %v682
        %vm776 = vcmp.lt.f32.partialorder %v775, 0.0004427343
        %v777 = vsel %vm776, %v774, %v771
        %v778 = vadd.f32 %v684, 1.0
        %v779 = vlog2.pop %v778
        %v780 = vmul.f32 %v779, 0.6931472
        %v781 = vmul.f32 -0.5, %v684
        %v782 = vadd.f32 %v781, 1.0
        %v783 = vmul.f32 %v782, %v684
        %v784 = vand.u32 2147483647, %v684
        %vm785 = vcmp.lt.f32.partialorder %v784, 0.0004427343
        %v786 = vsel %vm785, %v783, %v780
        %v787 = vadd.f32 %v686, 1.0
        %v788 = vlog2.pop %v787
        %v789 = vmul.f32 %v788, 0.6931472
        %v790 = vmul.f32 -0.5, %v686
        %v791 = vadd.f32 %v790, 1.0
        %v792 = vmul.f32 %v791, %v686
        %v793 = vand.u32 2147483647, %v686
        %vm794 = vcmp.lt.f32.partialorder %v793, 0.0004427343
        %v795 = vsel %vm794, %v792, %v789
        %v796 = vadd.f32 %v688, 1.0
        %v797 = vlog2.pop %v796
        %v798 = vmul.f32 %v797, 0.6931472
        %v799 = vmul.f32 -0.5, %v688
        %v800 = vadd.f32 %v799, 1.0
        %v801 = vmul.f32 %v800, %v688
        %v802 = vand.u32 2147483647, %v688
        %vm803 = vcmp.lt.f32.partialorder %v802, 0.0004427343
        %v804 = vsel %vm803, %v801, %v798
        %v805 = vadd.f32 %v690, 1.0
        %v806 = vlog2.pop %v805
        %v807 = vmul.f32 %v806, 0.6931472
        %v808 = vmul.f32 -0.5, %v690
        %v809 = vadd.f32 %v808, 1.0
        %v810 = vmul.f32 %v809, %v690
        %v811 = vand.u32 2147483647, %v690
        %vm812 = vcmp.lt.f32.partialorder %v811, 0.0004427343
        %v813 = vsel %vm812, %v810, %v807
        %v814 = vadd.f32 %v692, 1.0
        %v815 = vlog2.pop %v814
        %v816 = vmul.f32 %v815, 0.6931472
        %v817 = vmul.f32 -0.5, %v692
        %v818 = vadd.f32 %v817, 1.0
        %v819 = vmul.f32 %v818, %v692
        %v820 = vand.u32 2147483647, %v692
        %vm821 = vcmp.lt.f32.partialorder %v820, 0.0004427343
        %v822 = vsel %vm821, %v819, %v816
        %v823 = vadd.f32 %v694, 1.0
        %v824 = vlog2.pop %v823
        %v825 = vmul.f32 %v824, 0.6931472
        %v826 = vmul.f32 -0.5, %v694
        %v827 = vadd.f32 %v826, 1.0
        %v828 = vmul.f32 %v827, %v694
        %v829 = vand.u32 2147483647, %v694
        %vm830 = vcmp.lt.f32.partialorder %v829, 0.0004427343
        %v831 = vsel %vm830, %v828, %v825
        %v832 = vadd.f32 %v696, 1.0
        %v833 = vlog2.pop %v832
        %v834 = vmul.f32 %v833, 0.6931472
        %v835 = vmul.f32 -0.5, %v696
        %v836 = vadd.f32 %v835, 1.0
        %v837 = vmul.f32 %v836, %v696
        %v838 = vand.u32 2147483647, %v696
        %vm839 = vcmp.lt.f32.partialorder %v838, 0.0004427343
        %v840 = vsel %vm839, %v837, %v834
        %v841 = vmax.f32 %v617, 0.0
        %v842 = vmax.f32 %v618, 0.0
        %v843 = vmax.f32 %v619, 0.0
        %v844 = vmax.f32 %v620, 0.0
        %v845 = vmax.f32 %v621, 0.0
        %v846 = vmax.f32 %v622, 0.0
        %v847 = vmax.f32 %v623, 0.0
        %v848 = vmax.f32 %v624, 0.0
        %v849 = vmax.f32 %v625, 0.0
        %v850 = vmax.f32 %v626, 0.0
        %v851 = vmax.f32 %v627, 0.0
        %v852 = vmax.f32 %v628, 0.0
        %v853 = vmax.f32 %v629, 0.0
        %v854 = vmax.f32 %v630, 0.0
        %v855 = vmax.f32 %v631, 0.0
        %v856 = vmax.f32 %v632, 0.0
        %v857 = vadd.f32 %v841, %v705
        %v858 = vadd.f32 %v842, %v714
        %v859 = vadd.f32 %v843, %v723
        %v860 = vadd.f32 %v844, %v732
        %v861 = vadd.f32 %v845, %v741
        %v862 = vadd.f32 %v846, %v750
        %v863 = vadd.f32 %v847, %v759
        %v864 = vadd.f32 %v848, %v768
        %v865 = vadd.f32 %v849, %v777
        %v866 = vadd.f32 %v850, %v786
        %v867 = vadd.f32 %v851, %v795
        %v868 = vadd.f32 %v852, %v804
        %v869 = vadd.f32 %v853, %v813
        %v870 = vadd.f32 %v854, %v822
        %v871 = vadd.f32 %v855, %v831
        %v872 = vadd.f32 %v856, %v840
        %v873 = vpack.c.bf16 %v858, %v857
        %v874 = vpack.c.bf16 %v860, %v859
        %v875 = vpack.c.bf16 %v862, %v861
        %v876 = vpack.c.bf16 %v864, %v863
        %v877 = vpack.c.bf16 %v866, %v865
        %v878 = vpack.c.bf16 %v868, %v867
        %v879 = vpack.c.bf16 %v870, %v869
        %v880 = vpack.c.bf16 %v872, %v871
        %v881 = vld [vmem:[%s5] sm:$0xf]
        %v882 = vld [vmem:[%s5 + $0x4] sm:$0xf]
        %v883 = vld [vmem:[%s5 + $0x8] sm:$0xf]
        %v884 = vld [vmem:[%s5 + $0xc] sm:$0xf]
        %v885 = vld [vmem:[%s5 + $0x10] sm:$0xf]
        %v886 = vld [vmem:[%s5 + $0x14] sm:$0xf]
        %v887 = vld [vmem:[%s5 + $0x18] sm:$0xf]
        %v888 = vld [vmem:[%s5 + $0x1c] sm:$0xf]
        %v889 = vld [vmem:[%s5 + $0x20] sm:$0xf]
        %v890 = vld [vmem:[%s5 + $0x24] sm:$0xf]
        %v891 = vld [vmem:[%s5 + $0x28] sm:$0xf]
        %v892 = vld [vmem:[%s5 + $0x2c] sm:$0xf]
        %v893 = vld [vmem:[%s5 + $0x30] sm:$0xf]
        %v894 = vld [vmem:[%s5 + $0x34] sm:$0xf]
        %v895 = vld [vmem:[%s5 + $0x38] sm:$0xf]
        %v896 = vld [vmem:[%s5 + $0x3c] sm:$0xf]
        %v897 = vld [vmem:[%s6] sm:$0x1]
        %v899 = vlaneseq
        %v900 = vshrl.u32 %v899, 7
        %v901 = vsub.s32 0, %v900
        %v902 = vrot.slane %v897, %v901
        %v920 = vunpack.c.l.b16 %v881
        %v921 = vunpack.c.l.b16 %v882
        %v922 = vunpack.c.l.b16 %v883
        %v923 = vunpack.c.l.b16 %v884
        %v924 = vunpack.c.l.b16 %v885
        %v925 = vunpack.c.l.b16 %v886
        %v926 = vunpack.c.l.b16 %v887
        %v927 = vunpack.c.l.b16 %v888
        %v928 = vunpack.c.l.b16 %v889
        %v929 = vunpack.c.l.b16 %v890
        %v930 = vunpack.c.l.b16 %v891
        %v931 = vunpack.c.l.b16 %v892
        %v932 = vunpack.c.l.b16 %v893
        %v933 = vunpack.c.l.b16 %v894
        %v934 = vunpack.c.l.b16 %v895
        %v935 = vunpack.c.l.b16 %v896
        %v936 = vpack.c.b16 %v921, %v920
        %v937 = vpack.c.b16 %v923, %v922
        %v938 = vpack.c.b16 %v925, %v924
        %v939 = vpack.c.b16 %v927, %v926
        %v940 = vpack.c.b16 %v929, %v928
        %v941 = vpack.c.b16 %v931, %v930
        %v942 = vpack.c.b16 %v933, %v932
        %v943 = vpack.c.b16 %v935, %v934
        %952 = vmatprep.subr.bf16.mxu0 0
        %953 = vmatpush1.bf16.msra.mxu0 %v936
        %954 = vmatprep.subr.bf16.mxu0 0
        %955 = vmatpush1.bf16.msra.mxu0 %v937
        %956 = vmatprep.subr.bf16.mxu0 0
        %957 = vmatpush1.bf16.msra.mxu0 %v938
        %958 = vmatprep.subr.bf16.mxu0 0
        %959 = vmatpush1.bf16.msra.mxu0 %v939
        %960 = vmatprep.subr.bf16.mxu0 0
        %961 = vmatpush1.bf16.msra.mxu0 %v940
        %962 = vmatprep.subr.bf16.mxu0 0
        %963 = vmatpush1.bf16.msra.mxu0 %v941
        %964 = vmatprep.subr.bf16.mxu0 0
        %965 = vmatpush1.bf16.msra.mxu0 %v942
        %966 = vmatprep.subr.bf16.mxu0 0
        %967 = vmatpush1.bf16.msra.mxu0 %v943
        %968 = vmatprep.subr.bf16.mxu0 0
        %969 = vmatpush1.bf16.msra.mxu0 0
        %970 = vmatprep.subr.bf16.mxu0 0
        %971 = vmatpush1.bf16.msra.mxu0 0
        %972 = vmatprep.subr.bf16.mxu0 0
        %973 = vmatpush1.bf16.msra.mxu0 0
        %974 = vmatprep.subr.bf16.mxu0 0
        %975 = vmatpush1.bf16.msra.mxu0 0
        %976 = vmatprep.subr.bf16.mxu0 0
        %977 = vmatpush1.bf16.msra.mxu0 0
        %978 = vmatprep.subr.bf16.mxu0 0
        %979 = vmatpush1.bf16.msra.mxu0 0
        %980 = vmatprep.subr.bf16.mxu0 0
        %981 = vmatpush1.bf16.msra.mxu0 0
        %982 = vmatprep.subr.bf16.mxu0 0
        %983 = vmatpush1.bf16.msra.mxu0 0
        %984 = vmatprep.mubr.bf16.mxu0 0
        %985 = vmatmul.mubr.bf16.gmra.mrb[0].mxu0 %v873
        %v986 = vpop.f32.mrb[0].mxu0
        %v987 = vadd.f32 %v902, %v986
        %v988 = vpop.f32.mrb[0].mxu0
        %v989 = vpop.f32.mrb[0].mxu0
        %v990 = vadd.f32 %v902, %v989
        %v991 = vpop.f32.mrb[0].mxu0
        %992 = vmatprep.mubr.bf16.mxu0 0
        %993 = vmatmul.mubr.bf16.gmra.mrb[0].mxu0 %v874
        %v994 = vpop.f32.mrb[0].mxu0
        %v995 = vadd.f32 %v902, %v994
        %v996 = vpop.f32.mrb[0].mxu0
        %v997 = vpop.f32.mrb[0].mxu0
        %v998 = vadd.f32 %v902, %v997
        %v999 = vpop.f32.mrb[0].mxu0
        %1000 = vmatprep.mubr.bf16.mxu0 0
        %1001 = vmatmul.mubr.bf16.gmra.mrb[0].mxu0 %v875
        %v1002 = vpop.f32.mrb[0].mxu0
        %v1003 = vadd.f32 %v902, %v1002
        %v1004 = vpop.f32.mrb[0].mxu0
        %v1005 = vpop.f32.mrb[0].mxu0
        %v1006 = vadd.f32 %v902, %v1005
        %v1007 = vpop.f32.mrb[0].mxu0
        %1008 = vmatprep.mubr.bf16.mxu0 0
        %1009 = vmatmul.mubr.bf16.gmra.mrb[0].mxu0 %v876
        %v1010 = vpop.f32.mrb[0].mxu0
        %v1011 = vadd.f32 %v902, %v1010
        %v1012 = vpop.f32.mrb[0].mxu0
        %v1013 = vpop.f32.mrb[0].mxu0
        %v1014 = vadd.f32 %v902, %v1013
        %v1015 = vpop.f32.mrb[0].mxu0
        %1016 = vmatprep.mubr.bf16.mxu0 0
        %1017 = vmatmul.mubr.bf16.gmra.mrb[0].mxu0 %v877
        %v1018 = vpop.f32.mrb[0].mxu0
        %v1019 = vadd.f32 %v902, %v1018
        %v1020 = vpop.f32.mrb[0].mxu0
        %v1021 = vpop.f32.mrb[0].mxu0
        %v1022 = vadd.f32 %v902, %v1021
        %v1023 = vpop.f32.mrb[0].mxu0
        %1024 = vmatprep.mubr.bf16.mxu0 0
        %1025 = vmatmul.mubr.bf16.gmra.mrb[0].mxu0 %v878
        %v1026 = vpop.f32.mrb[0].mxu0
        %v1027 = vadd.f32 %v902, %v1026
        %v1028 = vpop.f32.mrb[0].mxu0
        %v1029 = vpop.f32.mrb[0].mxu0
        %v1030 = vadd.f32 %v902, %v1029
        %v1031 = vpop.f32.mrb[0].mxu0
        %1032 = vmatprep.mubr.bf16.mxu0 0
        %1033 = vmatmul.mubr.bf16.gmra.mrb[0].mxu0 %v879
        %v1034 = vpop.f32.mrb[0].mxu0
        %v1035 = vadd.f32 %v902, %v1034
        %v1036 = vpop.f32.mrb[0].mxu0
        %v1037 = vpop.f32.mrb[0].mxu0
        %v1038 = vadd.f32 %v902, %v1037
        %v1039 = vpop.f32.mrb[0].mxu0
        %1040 = vmatprep.mubr.bf16.mxu0 0
        %1041 = vmatmul.mubr.bf16.gmra.mrb[0].mxu0 %v880
        %v1042 = vpop.f32.mrb[0].mxu0
        %v1043 = vadd.f32 %v902, %v1042
        %v1044 = vpop.f32.mrb[0].mxu0
        %v1045 = vpop.f32.mrb[0].mxu0
        %v1046 = vadd.f32 %v902, %v1045
        %v1047 = vpop.f32.mrb[0].mxu0
        %1048 = vdwg.mxu0
        %v1049 = vand.u32 2147483647, %v987
        %v1050 = vand.u32 2147483647, %v990
        %v1051 = vand.u32 2147483647, %v995
        %v1052 = vand.u32 2147483647, %v998
        %v1053 = vand.u32 2147483647, %v1003
        %v1054 = vand.u32 2147483647, %v1006
        %v1055 = vand.u32 2147483647, %v1011
        %v1056 = vand.u32 2147483647, %v1014
        %v1057 = vand.u32 2147483647, %v1019
        %v1058 = vand.u32 2147483647, %v1022
        %v1059 = vand.u32 2147483647, %v1027
        %v1060 = vand.u32 2147483647, %v1030
        %v1061 = vand.u32 2147483647, %v1035
        %v1062 = vand.u32 2147483647, %v1038
        %v1063 = vand.u32 2147483647, %v1043
        %v1064 = vand.u32 2147483647, %v1046
        %v1065 = vsub.f32 0.0, %v1049
        %v1066 = vsub.f32 0.0, %v1050
        %v1067 = vsub.f32 0.0, %v1051
        %v1068 = vsub.f32 0.0, %v1052
        %v1069 = vsub.f32 0.0, %v1053
        %v1070 = vsub.f32 0.0, %v1054
        %v1071 = vsub.f32 0.0, %v1055
        %v1072 = vsub.f32 0.0, %v1056
        %v1073 = vsub.f32 0.0, %v1057
        %v1074 = vsub.f32 0.0, %v1058
        %v1075 = vsub.f32 0.0, %v1059
        %v1076 = vsub.f32 0.0, %v1060
        %v1077 = vsub.f32 0.0, %v1061
        %v1078 = vsub.f32 0.0, %v1062
        %v1079 = vsub.f32 0.0, %v1063
        %v1080 = vsub.f32 0.0, %v1064
        %v1081 = vmul.f32 %v1065, 1.442695
        %v1082 = vpow.pop %v1081
        %v1083 = vmul.f32 %v1066, 1.442695
        %v1084 = vpow.pop %v1083
        %v1085 = vmul.f32 %v1067, 1.442695
        %v1086 = vpow.pop %v1085
        %v1087 = vmul.f32 %v1068, 1.442695
        %v1088 = vpow.pop %v1087
        %v1089 = vmul.f32 %v1069, 1.442695
        %v1090 = vpow.pop %v1089
        %v1091 = vmul.f32 %v1070, 1.442695
        %v1092 = vpow.pop %v1091
        %v1093 = vmul.f32 %v1071, 1.442695
        %v1094 = vpow.pop %v1093
        %v1095 = vmul.f32 %v1072, 1.442695
        %v1096 = vpow.pop %v1095
        %v1097 = vmul.f32 %v1073, 1.442695
        %v1098 = vpow.pop %v1097
        %v1099 = vmul.f32 %v1074, 1.442695
        %v1100 = vpow.pop %v1099
        %v1101 = vmul.f32 %v1075, 1.442695
        %v1102 = vpow.pop %v1101
        %v1103 = vmul.f32 %v1076, 1.442695
        %v1104 = vpow.pop %v1103
        %v1105 = vmul.f32 %v1077, 1.442695
        %v1106 = vpow.pop %v1105
        %v1107 = vmul.f32 %v1078, 1.442695
        %v1108 = vpow.pop %v1107
        %v1109 = vmul.f32 %v1079, 1.442695
        %v1110 = vpow.pop %v1109
        %v1111 = vmul.f32 %v1080, 1.442695
        %v1112 = vpow.pop %v1111
        %v1113 = vadd.f32 %v1082, 1.0
        %v1114 = vlog2.pop %v1113
        %v1115 = vmul.f32 %v1114, 0.6931472
        %v1116 = vmul.f32 -0.5, %v1082
        %v1117 = vadd.f32 %v1116, 1.0
        %v1118 = vmul.f32 %v1117, %v1082
        %v1119 = vand.u32 2147483647, %v1082
        %vm1120 = vcmp.lt.f32.partialorder %v1119, 0.0004427343
        %v1121 = vsel %vm1120, %v1118, %v1115
        %v1122 = vadd.f32 %v1084, 1.0
        %v1123 = vlog2.pop %v1122
        %v1124 = vmul.f32 %v1123, 0.6931472
        %v1125 = vmul.f32 -0.5, %v1084
        %v1126 = vadd.f32 %v1125, 1.0
        %v1127 = vmul.f32 %v1126, %v1084
        %v1128 = vand.u32 2147483647, %v1084
        %vm1129 = vcmp.lt.f32.partialorder %v1128, 0.0004427343
        %v1130 = vsel %vm1129, %v1127, %v1124
        %v1131 = vadd.f32 %v1086, 1.0
        %v1132 = vlog2.pop %v1131
        %v1133 = vmul.f32 %v1132, 0.6931472
        %v1134 = vmul.f32 -0.5, %v1086
        %v1135 = vadd.f32 %v1134, 1.0
        %v1136 = vmul.f32 %v1135, %v1086
        %v1137 = vand.u32 2147483647, %v1086
        %vm1138 = vcmp.lt.f32.partialorder %v1137, 0.0004427343
        %v1139 = vsel %vm1138, %v1136, %v1133
        %v1140 = vadd.f32 %v1088, 1.0
        %v1141 = vlog2.pop %v1140
        %v1142 = vmul.f32 %v1141, 0.6931472
        %v1143 = vmul.f32 -0.5, %v1088
        %v1144 = vadd.f32 %v1143, 1.0
        %v1145 = vmul.f32 %v1144, %v1088
        %v1146 = vand.u32 2147483647, %v1088
        %vm1147 = vcmp.lt.f32.partialorder %v1146, 0.0004427343
        %v1148 = vsel %vm1147, %v1145, %v1142
        %v1149 = vadd.f32 %v1090, 1.0
        %v1150 = vlog2.pop %v1149
        %v1151 = vmul.f32 %v1150, 0.6931472
        %v1152 = vmul.f32 -0.5, %v1090
        %v1153 = vadd.f32 %v1152, 1.0
        %v1154 = vmul.f32 %v1153, %v1090
        %v1155 = vand.u32 2147483647, %v1090
        %vm1156 = vcmp.lt.f32.partialorder %v1155, 0.0004427343
        %v1157 = vsel %vm1156, %v1154, %v1151
        %v1158 = vadd.f32 %v1092, 1.0
        %v1159 = vlog2.pop %v1158
        %v1160 = vmul.f32 %v1159, 0.6931472
        %v1161 = vmul.f32 -0.5, %v1092
        %v1162 = vadd.f32 %v1161, 1.0
        %v1163 = vmul.f32 %v1162, %v1092
        %v1164 = vand.u32 2147483647, %v1092
        %vm1165 = vcmp.lt.f32.partialorder %v1164, 0.0004427343
        %v1166 = vsel %vm1165, %v1163, %v1160
        %v1167 = vadd.f32 %v1094, 1.0
        %v1168 = vlog2.pop %v1167
        %v1169 = vmul.f32 %v1168, 0.6931472
        %v1170 = vmul.f32 -0.5, %v1094
        %v1171 = vadd.f32 %v1170, 1.0
        %v1172 = vmul.f32 %v1171, %v1094
        %v1173 = vand.u32 2147483647, %v1094
        %vm1174 = vcmp.lt.f32.partialorder %v1173, 0.0004427343
        %v1175 = vsel %vm1174, %v1172, %v1169
        %v1176 = vadd.f32 %v1096, 1.0
        %v1177 = vlog2.pop %v1176
        %v1178 = vmul.f32 %v1177, 0.6931472
        %v1179 = vmul.f32 -0.5, %v1096
        %v1180 = vadd.f32 %v1179, 1.0
        %v1181 = vmul.f32 %v1180, %v1096
        %v1182 = vand.u32 2147483647, %v1096
        %vm1183 = vcmp.lt.f32.partialorder %v1182, 0.0004427343
        %v1184 = vsel %vm1183, %v1181, %v1178
        %v1185 = vadd.f32 %v1098, 1.0
        %v1186 = vlog2.pop %v1185
        %v1187 = vmul.f32 %v1186, 0.6931472
        %v1188 = vmul.f32 -0.5, %v1098
        %v1189 = vadd.f32 %v1188, 1.0
        %v1190 = vmul.f32 %v1189, %v1098
        %v1191 = vand.u32 2147483647, %v1098
        %vm1192 = vcmp.lt.f32.partialorder %v1191, 0.0004427343
        %v1193 = vsel %vm1192, %v1190, %v1187
        %v1194 = vadd.f32 %v1100, 1.0
        %v1195 = vlog2.pop %v1194
        %v1196 = vmul.f32 %v1195, 0.6931472
        %v1197 = vmul.f32 -0.5, %v1100
        %v1198 = vadd.f32 %v1197, 1.0
        %v1199 = vmul.f32 %v1198, %v1100
        %v1200 = vand.u32 2147483647, %v1100
        %vm1201 = vcmp.lt.f32.partialorder %v1200, 0.0004427343
        %v1202 = vsel %vm1201, %v1199, %v1196
        %v1203 = vadd.f32 %v1102, 1.0
        %v1204 = vlog2.pop %v1203
        %v1205 = vmul.f32 %v1204, 0.6931472
        %v1206 = vmul.f32 -0.5, %v1102
        %v1207 = vadd.f32 %v1206, 1.0
        %v1208 = vmul.f32 %v1207, %v1102
        %v1209 = vand.u32 2147483647, %v1102
        %vm1210 = vcmp.lt.f32.partialorder %v1209, 0.0004427343
        %v1211 = vsel %vm1210, %v1208, %v1205
        %v1212 = vadd.f32 %v1104, 1.0
        %v1213 = vlog2.pop %v1212
        %v1214 = vmul.f32 %v1213, 0.6931472
        %v1215 = vmul.f32 -0.5, %v1104
        %v1216 = vadd.f32 %v1215, 1.0
        %v1217 = vmul.f32 %v1216, %v1104
        %v1218 = vand.u32 2147483647, %v1104
        %vm1219 = vcmp.lt.f32.partialorder %v1218, 0.0004427343
        %v1220 = vsel %vm1219, %v1217, %v1214
        %v1221 = vadd.f32 %v1106, 1.0
        %v1222 = vlog2.pop %v1221
        %v1223 = vmul.f32 %v1222, 0.6931472
        %v1224 = vmul.f32 -0.5, %v1106
        %v1225 = vadd.f32 %v1224, 1.0
        %v1226 = vmul.f32 %v1225, %v1106
        %v1227 = vand.u32 2147483647, %v1106
        %vm1228 = vcmp.lt.f32.partialorder %v1227, 0.0004427343
        %v1229 = vsel %vm1228, %v1226, %v1223
        %v1230 = vadd.f32 %v1108, 1.0
        %v1231 = vlog2.pop %v1230
        %v1232 = vmul.f32 %v1231, 0.6931472
        %v1233 = vmul.f32 -0.5, %v1108
        %v1234 = vadd.f32 %v1233, 1.0
        %v1235 = vmul.f32 %v1234, %v1108
        %v1236 = vand.u32 2147483647, %v1108
        %vm1237 = vcmp.lt.f32.partialorder %v1236, 0.0004427343
        %v1238 = vsel %vm1237, %v1235, %v1232
        %v1239 = vadd.f32 %v1110, 1.0
        %v1240 = vlog2.pop %v1239
        %v1241 = vmul.f32 %v1240, 0.6931472
        %v1242 = vmul.f32 -0.5, %v1110
        %v1243 = vadd.f32 %v1242, 1.0
        %v1244 = vmul.f32 %v1243, %v1110
        %v1245 = vand.u32 2147483647, %v1110
        %vm1246 = vcmp.lt.f32.partialorder %v1245, 0.0004427343
        %v1247 = vsel %vm1246, %v1244, %v1241
        %v1248 = vadd.f32 %v1112, 1.0
        %v1249 = vlog2.pop %v1248
        %v1250 = vmul.f32 %v1249, 0.6931472
        %v1251 = vmul.f32 -0.5, %v1112
        %v1252 = vadd.f32 %v1251, 1.0
        %v1253 = vmul.f32 %v1252, %v1112
        %v1254 = vand.u32 2147483647, %v1112
        %vm1255 = vcmp.lt.f32.partialorder %v1254, 0.0004427343
        %v1256 = vsel %vm1255, %v1253, %v1250
        %v1257 = vmax.f32 %v987, 0.0
        %v1258 = vmax.f32 %v990, 0.0
        %v1259 = vmax.f32 %v995, 0.0
        %v1260 = vmax.f32 %v998, 0.0
        %v1261 = vmax.f32 %v1003, 0.0
        %v1262 = vmax.f32 %v1006, 0.0
        %v1263 = vmax.f32 %v1011, 0.0
        %v1264 = vmax.f32 %v1014, 0.0
        %v1265 = vmax.f32 %v1019, 0.0
        %v1266 = vmax.f32 %v1022, 0.0
        %v1267 = vmax.f32 %v1027, 0.0
        %v1268 = vmax.f32 %v1030, 0.0
        %v1269 = vmax.f32 %v1035, 0.0
        %v1270 = vmax.f32 %v1038, 0.0
        %v1271 = vmax.f32 %v1043, 0.0
        %v1272 = vmax.f32 %v1046, 0.0
        %v1273 = vadd.f32 %v1257, %v1121
        %v1274 = vadd.f32 %v1258, %v1130
        %v1275 = vadd.f32 %v1259, %v1139
        %v1276 = vadd.f32 %v1260, %v1148
        %v1277 = vadd.f32 %v1261, %v1157
        %v1278 = vadd.f32 %v1262, %v1166
        %v1279 = vadd.f32 %v1263, %v1175
        %v1280 = vadd.f32 %v1264, %v1184
        %v1281 = vadd.f32 %v1265, %v1193
        %v1282 = vadd.f32 %v1266, %v1202
        %v1283 = vadd.f32 %v1267, %v1211
        %v1284 = vadd.f32 %v1268, %v1220
        %v1285 = vadd.f32 %v1269, %v1229
        %v1286 = vadd.f32 %v1270, %v1238
        %v1287 = vadd.f32 %v1271, %v1247
        %v1288 = vadd.f32 %v1272, %v1256
        %1289 = vst [vmem:[%s288] sm:$0xff] %v1273
        %1290 = vst [vmem:[%s288 + $0x8] sm:$0xff] %v1274
        %1291 = vst [vmem:[%s288 + $0x10] sm:$0xff] %v1275
        %1292 = vst [vmem:[%s288 + $0x18] sm:$0xff] %v1276
        %1293 = vst [vmem:[%s288 + $0x20] sm:$0xff] %v1277
        %1294 = vst [vmem:[%s288 + $0x28] sm:$0xff] %v1278
        %1295 = vst [vmem:[%s288 + $0x30] sm:$0xff] %v1279
        %1296 = vst [vmem:[%s288 + $0x38] sm:$0xff] %v1280
        %1297 = vst [vmem:[%s288 + $0x40] sm:$0xff] %v1281
        %1298 = vst [vmem:[%s288 + $0x48] sm:$0xff] %v1282
        %1299 = vst [vmem:[%s288 + $0x50] sm:$0xff] %v1283
        %1300 = vst [vmem:[%s288 + $0x58] sm:$0xff] %v1284
        %1301 = vst [vmem:[%s288 + $0x60] sm:$0xff] %v1285
        %1302 = vst [vmem:[%s288 + $0x68] sm:$0xff] %v1286
        %1303 = vst [vmem:[%s288 + $0x70] sm:$0xff] %v1287
        %1304 = vst [vmem:[%s288 + $0x78] sm:$0xff] %v1288
        %s1305 = sand.u32 %s186, 1
        %s1306 = scalar_lea.sflag [#allocation3], %s1305
        %s1307 = sand.u32 %s186, 1
        %s1308 = smul.addr %s1307, 128
        %s1309 = scalar_lea.vmem [#allocation2], %s1308
        // Predicated region
        $region49: #{tpu_custom_call.1} parent=47 // pred_check
          %p1310 = pneg %p196
        $region50: #{tpu_custom_call.1} parent=47 // pred_check_branch
          %1312 = sbr.rel (%p1310) target = $region52
        $region51: #{tpu_custom_call.1} parent=47 // pred_region
          %s1313 = smul.u32 16, %s21
          %s1315 = ssub.s32 2048, 2048
          %1316 = vsyncadd %s1306, %s1315
          %s1317 = smul.addr %s1313, 128
          %s1318 = scalar_lea.hbm %s7, %s1317
          %s1319 = sshll.u32 %s1309, 4
          %s1320 = int_to_ptr.vmem [resolvable:$true] %s1319
          %1325 = dma.vmem_to_hbm [thread:$0]  %s1320, 2048, %s1318, %s1306, 128, 128, 8
        $region52: #{tpu_custom_call.1} parent=47 // pred_fallthru
          _
      $region48: #{tpu_custom_call.1} parent=5 // pred_fallthru
        _
      %p1326 = scmp.le.s32.totalorder 2, %s16
      // Predicated region
      $region53: #{tpu_custom_call.1} parent=5 // pred_check
        %p1327 = pneg %p1326
      $region54: #{tpu_custom_call.1} parent=5 // pred_check_branch
        %1329 = sbr.rel (%p1327) target = $region56
      $region55: #{tpu_custom_call.1} parent=5 // pred_region
        %s1330 = ssub.s32 %s16, 2
        // Predicated region
        $region57: #{tpu_custom_call.1} parent=55 // pred_check
          %p1331 = pneg %p202
        $region58: #{tpu_custom_call.1} parent=55 // pred_check_branch
          %1333 = sbr.rel (%p1331) target = $region60
        $region59: #{tpu_custom_call.1} parent=55 // pred_region
          %s1334 = sand.u32 %s187, 1
          %s1335 = scalar_lea.sflag [#allocation3], %s1334
          %s1336 = sand.u32 %s187, 1
          %s1337 = smul.addr %s1336, 128
          %s1338 = scalar_lea.vmem [#allocation2], %s1337
          %1339 = dma.done %s1335, 2048
        $region60: #{tpu_custom_call.1} parent=55 // pred_fallthru
          _
      $region56: #{tpu_custom_call.1} parent=5 // pred_fallthru
        _
    $region6: #{tpu_custom_call.1} parent=1 // loop_footer
      %s20 = sadd.s32 1, %s16
    $region7: #{tpu_custom_call.1} parent=1 // loop_footer_branch
      %15 = sbr.rel target = $region3
    $region8: #{tpu_custom_call.1} parent=1 // loop_exit
      _
    %1340 = vsyncpa [#allocation3], 1
    %s1341 = scalar_lea.sflag [#allocation3], 1
    %1342 = vsyncpa %s1341, 1

// kernel: tpu_custom_call.1
$region0: #{tpu_custom_call.1}
  #allocation0 [shape = 'u32[]', space=smem, size = 0x4, offset = 0x4, fixed_abs, tag = 'smem constant byte address 0x4 - core index']
  #allocation1 [shape = 'u32[144,128]{1,0:T(1,128)}', space=vmem, size = 0x12000, scoped, tag = 'internal scratch']
  %s0 = inlined_call_operand.vmem [shape: f32[256,16], index: 0, kind: input, shape index: {}]
  %s1 = inlined_call_operand.vmem [shape: f32[256,16], index: 1, kind: input, shape index: {}]
  %s2 = inlined_call_operand.vmem [shape: bf16[16,128], index: 2, kind: input, shape index: {}]
  %s3 = inlined_call_operand.vmem [shape: bf16[16,128], index: 3, kind: input, shape index: {}]
  %s4 = inlined_call_operand.vmem [shape: f32[1,128], index: 4, kind: input, shape index: {}]
  %s5 = inlined_call_operand.vmem [shape: bf16[128,128], index: 5, kind: input, shape index: {}]
  %s6 = inlined_call_operand.vmem [shape: f32[1,128], index: 6, kind: input, shape index: {}]
  %s7 = inlined_call_operand.hbm [shape: f32[256,128], index: 7, kind: output, shape index: {}]
  %s8 = sld [smem:[#allocation0]]
  $region61: #{tpu_custom_call.1} parent=0
    _
  %s10 = ssub.s32 1, %s8
  %s11 = scalar_select 0, %s10, %s8
  $region1: #{tpu_custom_call.1} parent=0
    #allocation2 [shape = 'u8[131072]{0}', space=vmem, size = 0x20000, scoped, tag = 'output window, operand 0']
    #allocation3 [shape = 's32[2]{0}', space=sflag, size = 0x8, scoped, tag = 'scoped memory for tpu_custom_call.1']
    %12 = vsyncpa [#allocation3], 0
    %s13 = scalar_lea.sflag [#allocation3], 1
    %14 = vsyncpa %s13, 0
    loop: start=0, step=1, limit=4
    $region2: #{tpu_custom_call.1} parent=1 // loop_pre_header
      _
    $region3: #{tpu_custom_call.1} parent=1 // loop_header
      %s16 = sphi 0, %s20
      %p17 = scmp.ge.s32.totalorder %s16, 4
      %s26 = sphi 0, %s28
      %s29 = sphi 0, %s26
      %s30 = sphi 0, %s29
      %s46 = sphi 0, %s30
      %s52 = sphi 0, %s54
      %s55 = sphi 0, %s52
      %s56 = sphi 0, %s55
      %s72 = sphi 0, %s56
      %s76 = sphi 0, %s76
      %s78 = sphi 0, %s76
      %s79 = sphi 0, %s78
      %s93 = sphi 0, %s79
      %s97 = sphi 0, %s97
      %s99 = sphi 0, %s97
      %s100 = sphi 0, %s99
      %s114 = sphi 0, %s100
      %s118 = sphi 0, %s118
      %s120 = sphi 0, %s118
      %s121 = sphi 0, %s120
      %s135 = sphi 0, %s121
      %s139 = sphi 0, %s139
      %s141 = sphi 0, %s139
      %s142 = sphi 0, %s141
      %s156 = sphi 0, %s142
      %s160 = sphi 0, %s160
      %s162 = sphi 0, %s160
      %s163 = sphi 0, %s162
      %s177 = sphi 0, %s163
      %s183 = sphi 0, %s185
      %s186 = sphi 0, %s183
      %s187 = sphi 0, %s186
      %s203 = sphi 0, %s187
    $region4: #{tpu_custom_call.1} parent=1 // loop_header_branch
      %19 = sbr.rel (%p17) target = $region8
    $region5: #{tpu_custom_call.1} parent=1 // loop_body
      %s21 = ssub.s32 %s16, 1
      %s22 = ssub.s32 %s16, 2
      %s23 = sadd.s32 %s16, 1
      %s24 = ssub.s32 %s16, %s23
      %p25 = scmp.eq.s32.totalorder %s24, 0
      %s27 = sadd.s32 %s26, 1
      %s28 = scalar_select %p25, %s26, %s27
      %p31 = pneg %p25
      %p32 = scmp.eq.s32.totalorder %s16, 1
      %p33 = por %p31, %p32
      %p34 = scmp.ne.s32.totalorder %s26, %s29
      %p35 = scmp.eq.s32.totalorder %s16, 0
      %p36 = por %p34, %p35
      %p37 = scmp.ne.s32.totalorder %s26, %s29
      %p38 = scmp.eq.s32.totalorder %s21, 1
      %p39 = por %p37, %p38
      %p40 = scmp.ne.s32.totalorder %s29, %s30
      %p41 = scmp.eq.s32.totalorder %s21, 0
      %p42 = por %p40, %p41
      %p43 = scmp.ne.s32.totalorder %s29, %s30
      %p44 = scmp.eq.s32.totalorder %s22, 1
      %p45 = por %p43, %p44
      %p47 = scmp.ne.s32.totalorder %s30, %s46
      %p48 = scmp.eq.s32.totalorder %s22, 0
      %p49 = por %p47, %p48
      %s50 = ssub.s32 %s16, %s23
      %p51 = scmp.eq.s32.totalorder %s50, 0
      %s53 = sadd.s32 %s52, 1
      %s54 = scalar_select %p51, %s52, %s53
      %p57 = pneg %p51
      %p58 = scmp.eq.s32.totalorder %s16, 1
      %p59 = por %p57, %p58
      %p60 = scmp.ne.s32.totalorder %s52, %s55
      %p61 = scmp.eq.s32.totalorder %s16, 0
      %p62 = por %p60, %p61
      %p63 = scmp.ne.s32.totalorder %s52, %s55
      %p64 = scmp.eq.s32.totalorder %s21, 1
      %p65 = por %p63, %p64
      %p66 = scmp.ne.s32.totalorder %s55, %s56
      %p67 = scmp.eq.s32.totalorder %s21, 0
      %p68 = por %p66, %p67
      %p69 = scmp.ne.s32.totalorder %s55, %s56
      %p70 = scmp.eq.s32.totalorder %s22, 1
      %p71 = por %p69, %p70
      %p73 = scmp.ne.s32.totalorder %s56, %s72
      %p74 = scmp.eq.s32.totalorder %s22, 0
      %p75 = por %p73, %p74
      %s77 = sadd.s32 %s76, 1
      %p80 = scmp.eq.s32.totalorder %s16, 1
      %p81 = scmp.ne.s32.totalorder %s76, %s78
      %p82 = scmp.eq.s32.totalorder %s16, 0
      %p83 = por %p81, %p82
      %p84 = scmp.ne.s32.totalorder %s76, %s78
      %p85 = scmp.eq.s32.totalorder %s21, 1
      %p86 = por %p84, %p85
      %p87 = scmp.ne.s32.totalorder %s78, %s79
      %p88 = scmp.eq.s32.totalorder %s21, 0
      %p89 = por %p87, %p88
      %p90 = scmp.ne.s32.totalorder %s78, %s79
      %p91 = scmp.eq.s32.totalorder %s22, 1
      %p92 = por %p90, %p91
      %p94 = scmp.ne.s32.totalorder %s79, %s93
      %p95 = scmp.eq.s32.totalorder %s22, 0
      %p96 = por %p94, %p95
      %s98 = sadd.s32 %s97, 1
      %p101 = scmp.eq.s32.totalorder %s16, 1
      %p102 = scmp.ne.s32.totalorder %s97, %s99
      %p103 = scmp.eq.s32.totalorder %s16, 0
      %p104 = por %p102, %p103
      %p105 = scmp.ne.s32.totalorder %s97, %s99
      %p106 = scmp.eq.s32.totalorder %s21, 1
      %p107 = por %p105, %p106
      %p108 = scmp.ne.s32.totalorder %s99, %s100
      %p109 = scmp.eq.s32.totalorder %s21, 0
      %p110 = por %p108, %p109
      %p111 = scmp.ne.s32.totalorder %s99, %s100
      %p112 = scmp.eq.s32.totalorder %s22, 1
      %p113 = por %p111, %p112
      %p115 = scmp.ne.s32.totalorder %s100, %s114
      %p116 = scmp.eq.s32.totalorder %s22, 0
      %p117 = por %p115, %p116
      %s119 = sadd.s32 %s118, 1
      %p122 = scmp.eq.s32.totalorder %s16, 1
      %p123 = scmp.ne.s32.totalorder %s118, %s120
      %p124 = scmp.eq.s32.totalorder %s16, 0
      %p125 = por %p123, %p124
      %p126 = scmp.ne.s32.totalorder %s118, %s120
      %p127 = scmp.eq.s32.totalorder %s21, 1
      %p128 = por %p126, %p127
      %p129 = scmp.ne.s32.totalorder %s120, %s121
      %p130 = scmp.eq.s32.totalorder %s21, 0
      %p131 = por %p129, %p130
      %p132 = scmp.ne.s32.totalorder %s120, %s121
      %p133 = scmp.eq.s32.totalorder %s22, 1
      %p134 = por %p132, %p133
      %p136 = scmp.ne.s32.totalorder %s121, %s135
      %p137 = scmp.eq.s32.totalorder %s22, 0
      %p138 = por %p136, %p137
      %s140 = sadd.s32 %s139, 1
      %p143 = scmp.eq.s32.totalorder %s16, 1
      %p144 = scmp.ne.s32.totalorder %s139, %s141
      %p145 = scmp.eq.s32.totalorder %s16, 0
      %p146 = por %p144, %p145
      %p147 = scmp.ne.s32.totalorder %s139, %s141
      %p148 = scmp.eq.s32.totalorder %s21, 1
      %p149 = por %p147, %p148
      %p150 = scmp.ne.s32.totalorder %s141, %s142
      %p151 = scmp.eq.s32.totalorder %s21, 0
      %p152 = por %p150, %p151
      %p153 = scmp.ne.s32.totalorder %s141, %s142
      %p154 = scmp.eq.s32.totalorder %s22, 1
      %p155 = por %p153, %p154
      %p157 = scmp.ne.s32.totalorder %s142, %s156
      %p158 = scmp.eq.s32.totalorder %s22, 0
      %p159 = por %p157, %p158
      %s161 = sadd.s32 %s160, 1
      %p164 = scmp.eq.s32.totalorder %s16, 1
      %p165 = scmp.ne.s32.totalorder %s160, %s162
      %p166 = scmp.eq.s32.totalorder %s16, 0
      %p167 = por %p165, %p166
      %p168 = scmp.ne.s32.totalorder %s160, %s162
      %p169 = scmp.eq.s32.totalorder %s21, 1
      %p170 = por %p168, %p169
      %p171 = scmp.ne.s32.totalorder %s162, %s163
      %p172 = scmp.eq.s32.totalorder %s21, 0
      %p173 = por %p171, %p172
      %p174 = scmp.ne.s32.totalorder %s162, %s163
      %p175 = scmp.eq.s32.totalorder %s22, 1
      %p176 = por %p174, %p175
      %p178 = scmp.ne.s32.totalorder %s163, %s177
      %p179 = scmp.eq.s32.totalorder %s22, 0
      %p180 = por %p178, %p179
      %s181 = ssub.s32 %s16, %s23
      %p182 = scmp.eq.s32.totalorder %s181, 0
      %s184 = sadd.s32 %s183, 1
      %s185 = scalar_select %p182, %s183, %s184
      %p188 = pneg %p182
      %p189 = scmp.eq.s32.totalorder %s16, 1
      %p190 = por %p188, %p189
      %p191 = scmp.ne.s32.totalorder %s183, %s186
      %p192 = scmp.eq.s32.totalorder %s16, 0
      %p193 = por %p191, %p192
      %p194 = scmp.ne.s32.totalorder %s183, %s186
      %p195 = scmp.eq.s32.totalorder %s21, 1
      %p196 = por %p194, %p195
      %p197 = scmp.ne.s32.totalorder %s186, %s187
      %p198 = scmp.eq.s32.totalorder %s21, 0
      %p199 = por %p197, %p198
      %p200 = scmp.ne.s32.totalorder %s186, %s187
      %p201 = scmp.eq.s32.totalorder %s22, 1
      %p202 = por %p200, %p201
      %p204 = scmp.ne.s32.totalorder %s187, %s203
      %p205 = scmp.eq.s32.totalorder %s22, 0
      %p206 = por %p204, %p205
      %p207 = scmp.le.s32.totalorder 1, %s16
      %p208 = scmp.lt.s32.totalorder %s16, 3
      %p209 = pnand %p207, %p208
      %p210 = pneg %p209
      // Predicated region
      $region9: #{tpu_custom_call.1} parent=5 // pred_check
        _
      $region10: #{tpu_custom_call.1} parent=5 // pred_check_branch
        %212 = sbr.rel (%p209) target = $region12
      $region11: #{tpu_custom_call.1} parent=5 // pred_region
        %s213 = ssub.s32 %s16, 1
        // Predicated region
        $region13: #{tpu_custom_call.1} parent=11 // pred_check
          %p214 = pneg %p89
        $region14: #{tpu_custom_call.1} parent=11 // pred_check_branch
          %216 = sbr.rel (%p214) target = $region16
        $region15: #{tpu_custom_call.1} parent=11 // pred_region
          _
        $region16: #{tpu_custom_call.1} parent=11 // pred_fallthru
          _
        // Predicated region
        $region17: #{tpu_custom_call.1} parent=11 // pred_check
          %p217 = pneg %p110
        $region18: #{tpu_custom_call.1} parent=11 // pred_check_branch
          %219 = sbr.rel (%p217) target = $region20
        $region19: #{tpu_custom_call.1} parent=11 // pred_region
          _
        $region20: #{tpu_custom_call.1} parent=11 // pred_fallthru
          _
        // Predicated region
        $region21: #{tpu_custom_call.1} parent=11 // pred_check
          %p220 = pneg %p131
        $region22: #{tpu_custom_call.1} parent=11 // pred_check_branch
          %222 = sbr.rel (%p220) target = $region24
        $region23: #{tpu_custom_call.1} parent=11 // pred_region
          _
        $region24: #{tpu_custom_call.1} parent=11 // pred_fallthru
          _
        // Predicated region
        $region25: #{tpu_custom_call.1} parent=11 // pred_check
          %p223 = pneg %p152
        $region26: #{tpu_custom_call.1} parent=11 // pred_check_branch
          %225 = sbr.rel (%p223) target = $region28
        $region27: #{tpu_custom_call.1} parent=11 // pred_region
          _
        $region28: #{tpu_custom_call.1} parent=11 // pred_fallthru
          _
        // Predicated region
        $region29: #{tpu_custom_call.1} parent=11 // pred_check
          %p226 = pneg %p173
        $region30: #{tpu_custom_call.1} parent=11 // pred_check_branch
          %228 = sbr.rel (%p226) target = $region32
        $region31: #{tpu_custom_call.1} parent=11 // pred_region
          _
        $region32: #{tpu_custom_call.1} parent=11 // pred_fallthru
          _
      $region12: #{tpu_custom_call.1} parent=5 // pred_fallthru
        _
      %p229 = scmp.lt.s32.totalorder %s16, 2
      // Predicated region
      $region33: #{tpu_custom_call.1} parent=5 // pred_check
        %p230 = pneg %p229
      $region34: #{tpu_custom_call.1} parent=5 // pred_check_branch
        %232 = sbr.rel (%p230) target = $region36
      $region35: #{tpu_custom_call.1} parent=5 // pred_region
        // Predicated region
        $region37: #{tpu_custom_call.1} parent=35 // pred_check
          %p233 = pneg %p36
        $region38: #{tpu_custom_call.1} parent=35 // pred_check_branch
          %235 = sbr.rel (%p233) target = $region40
        $region39: #{tpu_custom_call.1} parent=35 // pred_region
          %s236 = smul.u32 16, %s16
          %p237 = scmp.lt.s32.totalorder %s236, 31
          %s238 = scalar_select %p237, %s236, 31
          %s239 = smul.addr %s238, 8
          %s240 = scalar_lea.vmem %s0, %s239
          %s241 = smul.u32 16, %s16
        $region40: #{tpu_custom_call.1} parent=35 // pred_fallthru
          _
        // Predicated region
        $region41: #{tpu_custom_call.1} parent=35 // pred_check
          %p242 = pneg %p62
        $region42: #{tpu_custom_call.1} parent=35 // pred_check_branch
          %244 = sbr.rel (%p242) target = $region44
        $region43: #{tpu_custom_call.1} parent=35 // pred_region
          %s245 = smul.u32 16, %s16
          %p246 = scmp.lt.s32.totalorder %s245, 31
          %s247 = scalar_select %p246, %s245, 31
          %s248 = smul.addr %s247, 8
          %s249 = scalar_lea.vmem %s1, %s248
          %s250 = smul.u32 16, %s16
        $region44: #{tpu_custom_call.1} parent=35 // pred_fallthru
          _
      $region36: #{tpu_custom_call.1} parent=5 // pred_fallthru
        _
      %p251 = scmp.le.s32.totalorder 1, %s16
      %p252 = scmp.lt.s32.totalorder %s16, 3
      %p253 = pnand %p251, %p252
      %p254 = pneg %p253
      // Predicated region
      $region45: #{tpu_custom_call.1} parent=5 // pred_check
        _
      $region46: #{tpu_custom_call.1} parent=5 // pred_check_branch
        %256 = sbr.rel (%p253) target = $region48
      $region47: #{tpu_custom_call.1} parent=5 // pred_region
        %s257 = ssub.s32 %s16, 1
        %s258 = smul.u32 16, %s21
        %p259 = scmp.lt.s32.totalorder %s258, 31
        %s260 = scalar_select %p259, %s258, 31
        %s261 = smul.addr %s260, 8
        %s262 = scalar_lea.vmem %s0, %s261
        %p263 = pneg %p42
        %p264 = pneg %p39
        %s265 = smul.u32 16, %s21
        %p266 = scmp.lt.s32.totalorder %s265, 31
        %s267 = scalar_select %p266, %s265, 31
        %s268 = smul.addr %s267, 8
        %s269 = scalar_lea.vmem %s1, %s268
        %p270 = pneg %p68
        %p271 = pneg %p65
        %p272 = pneg %p89
        %p273 = pneg %p86
        %p274 = pneg %p110
        %p275 = pneg %p107
        %p276 = pneg %p131
        %p277 = pneg %p128
        %p278 = pneg %p152
        %p279 = pneg %p149
        %p280 = pneg %p173
        %p281 = pneg %p170
        %p282 = pneg %p199
        %p283 = pneg %p196
        %s284 = sand.u32 %s186, 1
        %s285 = scalar_lea.sflag [#allocation3], %s284
        %s286 = sand.u32 %s186, 1
        %s287 = smul.addr %s286, 128
        %s288 = scalar_lea.vmem [#allocation2], %s287
        %s289 = smul.u32 16, %s21
        %p290 = scmp.lt.s32.totalorder %s289, 31
        %s291 = scalar_select %p290, %s289, 31
        %s292 = smul.addr %s291, 8
        %s293 = scalar_lea.vmem %s0, %s292
        %s294 = smul.u32 16, %s21
        %s295 = smul.u32 16, %s21
        %p296 = scmp.lt.s32.totalorder %s295, 31
        %s297 = scalar_select %p296, %s295, 31
        %s298 = smul.addr %s297, 8
        %s299 = scalar_lea.vmem %s1, %s298
        %s300 = smul.u32 16, %s21
        %s301 = smul.u32 16, %s21
        %v303 = vld [vmem:[%s293] sm:$0xff]
        %v304 = vld [vmem:[%s293 + $0x8] sm:$0xff]
        %v305 = vld [vmem:[%s293 + $0x10] sm:$0xff]
        %v306 = vld [vmem:[%s293 + $0x18] sm:$0xff]
        %v307 = vld [vmem:[%s293 + $0x20] sm:$0xff]
        %v308 = vld [vmem:[%s293 + $0x28] sm:$0xff]
        %v309 = vld [vmem:[%s293 + $0x30] sm:$0xff]
        %v310 = vld [vmem:[%s293 + $0x38] sm:$0xff]
        %v311 = vld [vmem:[%s293 + $0x40] sm:$0xff]
        %v312 = vld [vmem:[%s293 + $0x48] sm:$0xff]
        %v313 = vld [vmem:[%s293 + $0x50] sm:$0xff]
        %v314 = vld [vmem:[%s293 + $0x58] sm:$0xff]
        %v315 = vld [vmem:[%s293 + $0x60] sm:$0xff]
        %v316 = vld [vmem:[%s293 + $0x68] sm:$0xff]
        %v317 = vld [vmem:[%s293 + $0x70] sm:$0xff]
        %v318 = vld [vmem:[%s293 + $0x78] sm:$0xff]
        %v319 = vpack.c.bf16 %v304, %v303
        %v320 = vpack.c.bf16 %v306, %v305
        %v321 = vpack.c.bf16 %v308, %v307
        %v322 = vpack.c.bf16 %v310, %v309
        %v323 = vpack.c.bf16 %v312, %v311
        %v324 = vpack.c.bf16 %v314, %v313
        %v325 = vpack.c.bf16 %v316, %v315
        %v326 = vpack.c.bf16 %v318, %v317
        %v327 = vld [vmem:[%s2] sm:$0xf]
        %v328 = vld [vmem:[%s2 + $0x4] sm:$0xf]
        %v329 = vld [vmem:[%s299] sm:$0xff]
        %v330 = vld [vmem:[%s299 + $0x8] sm:$0xff]
        %v331 = vld [vmem:[%s299 + $0x10] sm:$0xff]
        %v332 = vld [vmem:[%s299 + $0x18] sm:$0xff]
        %v333 = vld [vmem:[%s299 + $0x20] sm:$0xff]
        %v334 = vld [vmem:[%s299 + $0x28] sm:$0xff]
        %v335 = vld [vmem:[%s299 + $0x30] sm:$0xff]
        %v336 = vld [vmem:[%s299 + $0x38] sm:$0xff]
        %v337 = vld [vmem:[%s299 + $0x40] sm:$0xff]
        %v338 = vld [vmem:[%s299 + $0x48] sm:$0xff]
        %v339 = vld [vmem:[%s299 + $0x50] sm:$0xff]
        %v340 = vld [vmem:[%s299 + $0x58] sm:$0xff]
        %v341 = vld [vmem:[%s299 + $0x60] sm:$0xff]
        %v342 = vld [vmem:[%s299 + $0x68] sm:$0xff]
        %v343 = vld [vmem:[%s299 + $0x70] sm:$0xff]
        %v344 = vld [vmem:[%s299 + $0x78] sm:$0xff]
        %v345 = vpack.c.bf16 %v330, %v329
        %v346 = vpack.c.bf16 %v332, %v331
        %v347 = vpack.c.bf16 %v334, %v333
        %v348 = vpack.c.bf16 %v336, %v335
        %v349 = vpack.c.bf16 %v338, %v337
        %v350 = vpack.c.bf16 %v340, %v339
        %v351 = vpack.c.bf16 %v342, %v341
        %v352 = vpack.c.bf16 %v344, %v343
        %v353 = vld [vmem:[%s3] sm:$0xf]
        %v354 = vld [vmem:[%s3 + $0x4] sm:$0xf]
        %v357 = vunpack.c.l.b16 %v353
        %v358 = vunpack.c.l.b16 %v354
        %v359 = vpack.c.b16 %v358, %v357
        %vm361 = vcmask 130048
        %v363 = vsel %vm361, %v345, 0
        %v366 = vsel %vm361, %v346, 0
        %v369 = vsel %vm361, %v347, 0
        %v372 = vsel %vm361, %v348, 0
        %v375 = vsel %vm361, %v349, 0
        %v378 = vsel %vm361, %v350, 0
        %v381 = vsel %vm361, %v351, 0
        %v384 = vsel %vm361, %v352, 0
        %386 = vmatprep.subr.bf16.mxu0 0
        %387 = vmatpush1.bf16.msra.mxu0 %v359
        %388 = vmatprep.subr.bf16.mxu0 0
        %389 = vmatpush1.bf16.msra.mxu0 0
        %390 = vmatprep.subr.bf16.mxu0 0
        %391 = vmatpush1.bf16.msra.mxu0 0
        %392 = vmatprep.subr.bf16.mxu0 0
        %393 = vmatpush1.bf16.msra.mxu0 0
        %394 = vmatprep.subr.bf16.mxu0 0
        %395 = vmatpush1.bf16.msra.mxu0 0
        %396 = vmatprep.subr.bf16.mxu0 0
        %397 = vmatpush1.bf16.msra.mxu0 0
        %398 = vmatprep.subr.bf16.mxu0 0
        %399 = vmatpush1.bf16.msra.mxu0 0
        %400 = vmatprep.subr.bf16.mxu0 0
        %401 = vmatpush1.bf16.msra.mxu0 0
        %402 = vmatprep.subr.bf16.mxu0 0
        %403 = vmatpush1.bf16.msra.mxu0 0
        %404 = vmatprep.subr.bf16.mxu0 0
        %405 = vmatpush1.bf16.msra.mxu0 0
        %406 = vmatprep.subr.bf16.mxu0 0
        %407 = vmatpush1.bf16.msra.mxu0 0
        %408 = vmatprep.subr.bf16.mxu0 0
        %409 = vmatpush1.bf16.msra.mxu0 0
        %410 = vmatprep.subr.bf16.mxu0 0
        %411 = vmatpush1.bf16.msra.mxu0 0
        %412 = vmatprep.subr.bf16.mxu0 0
        %413 = vmatpush1.bf16.msra.mxu0 0
        %414 = vmatprep.subr.bf16.mxu0 0
        %415 = vmatpush1.bf16.msra.mxu0 0
        %416 = vmatprep.subr.bf16.mxu0 0
        %417 = vmatpush1.bf16.msra.mxu0 0
        %418 = vmatprep.mubr.bf16.mxu0 0
        %419 = vmatmul.mubr.bf16.gmra.mrb[0].mxu0 %v363
        %v420 = vpop.f32.mrb[0].mxu0
        %v421 = vadd.f32 0.0, %v420
        %v422 = vpop.f32.mrb[0].mxu0
        %v423 = vpop.f32.mrb[0].mxu0
        %v424 = vadd.f32 0.0, %v423
        %v425 = vpop.f32.mrb[0].mxu0
        %426 = vmatprep.mubr.bf16.mxu0 0
        %427 = vmatmul.mubr.bf16.gmra.mrb[0].mxu0 %v366
        %v428 = vpop.f32.mrb[0].mxu0
        %v429 = vadd.f32 0.0, %v428
        %v430 = vpop.f32.mrb[0].mxu0
        %v431 = vpop.f32.mrb[0].mxu0
        %v432 = vadd.f32 0.0, %v431
        %v433 = vpop.f32.mrb[0].mxu0
        %434 = vmatprep.mubr.bf16.mxu0 0
        %435 = vmatmul.mubr.bf16.gmra.mrb[0].mxu0 %v369
        %v436 = vpop.f32.mrb[0].mxu0
        %v437 = vadd.f32 0.0, %v436
        %v438 = vpop.f32.mrb[0].mxu0
        %v439 = vpop.f32.mrb[0].mxu0
        %v440 = vadd.f32 0.0, %v439
        %v441 = vpop.f32.mrb[0].mxu0
        %442 = vmatprep.mubr.bf16.mxu0 0
        %443 = vmatmul.mubr.bf16.gmra.mrb[0].mxu0 %v372
        %v444 = vpop.f32.mrb[0].mxu0
        %v445 = vadd.f32 0.0, %v444
        %v446 = vpop.f32.mrb[0].mxu0
        %v447 = vpop.f32.mrb[0].mxu0
        %v448 = vadd.f32 0.0, %v447
        %v449 = vpop.f32.mrb[0].mxu0
        %450 = vmatprep.mubr.bf16.mxu0 0
        %451 = vmatmul.mubr.bf16.gmra.mrb[0].mxu0 %v375
        %v452 = vpop.f32.mrb[0].mxu0
        %v453 = vadd.f32 0.0, %v452
        %v454 = vpop.f32.mrb[0].mxu0
        %v455 = vpop.f32.mrb[0].mxu0
        %v456 = vadd.f32 0.0, %v455
        %v457 = vpop.f32.mrb[0].mxu0
        %458 = vmatprep.mubr.bf16.mxu0 0
        %459 = vmatmul.mubr.bf16.gmra.mrb[0].mxu0 %v378
        %v460 = vpop.f32.mrb[0].mxu0
        %v461 = vadd.f32 0.0, %v460
        %v462 = vpop.f32.mrb[0].mxu0
        %v463 = vpop.f32.mrb[0].mxu0
        %v464 = vadd.f32 0.0, %v463
        %v465 = vpop.f32.mrb[0].mxu0
        %466 = vmatprep.mubr.bf16.mxu0 0
        %467 = vmatmul.mubr.bf16.gmra.mrb[0].mxu0 %v381
        %v468 = vpop.f32.mrb[0].mxu0
        %v469 = vadd.f32 0.0, %v468
        %v470 = vpop.f32.mrb[0].mxu0
        %v471 = vpop.f32.mrb[0].mxu0
        %v472 = vadd.f32 0.0, %v471
        %v473 = vpop.f32.mrb[0].mxu0
        %474 = vmatprep.mubr.bf16.mxu0 0
        %475 = vmatmul.mubr.bf16.gmra.mrb[0].mxu0 %v384
        %v476 = vpop.f32.mrb[0].mxu0
        %v477 = vadd.f32 0.0, %v476
        %v478 = vpop.f32.mrb[0].mxu0
        %v479 = vpop.f32.mrb[0].mxu0
        %v480 = vadd.f32 0.0, %v479
        %v481 = vpop.f32.mrb[0].mxu0
        %482 = vdwg.mxu0
        %v485 = vunpack.c.l.b16 %v327
        %v486 = vunpack.c.l.b16 %v328
        %v487 = vpack.c.b16 %v486, %v485
        %v490 = vsel %vm361, %v319, 0
        %v493 = vsel %vm361, %v320, 0
        %v496 = vsel %vm361, %v321, 0
        %v499 = vsel %vm361, %v322, 0
        %v502 = vsel %vm361, %v323, 0
        %v505 = vsel %vm361, %v324, 0
        %v508 = vsel %vm361, %v325, 0
        %v511 = vsel %vm361, %v326, 0
        %513 = vmatprep.subr.bf16.mxu0 0
        %514 = vmatpush1.bf16.msra.mxu0 %v487
        %515 = vmatprep.subr.bf16.mxu0 0
        %516 = vmatpush1.bf16.msra.mxu0 0
        %517 = vmatprep.subr.bf16.mxu0 0
        %518 = vmatpush1.bf16.msra.mxu0 0
        %519 = vmatprep.subr.bf16.mxu0 0
        %520 = vmatpush1.bf16.msra.mxu0 0
        %521 = vmatprep.subr.bf16.mxu0 0
        %522 = vmatpush1.bf16.msra.mxu0 0
        %523 = vmatprep.subr.bf16.mxu0 0
        %524 = vmatpush1.bf16.msra.mxu0 0
        %525 = vmatprep.subr.bf16.mxu0 0
        %526 = vmatpush1.bf16.msra.mxu0 0
        %527 = vmatprep.subr.bf16.mxu0 0
        %528 = vmatpush1.bf16.msra.mxu0 0
        %529 = vmatprep.subr.bf16.mxu0 0
        %530 = vmatpush1.bf16.msra.mxu0 0
        %531 = vmatprep.subr.bf16.mxu0 0
        %532 = vmatpush1.bf16.msra.mxu0 0
        %533 = vmatprep.subr.bf16.mxu0 0
        %534 = vmatpush1.bf16.msra.mxu0 0
        %535 = vmatprep.subr.bf16.mxu0 0
        %536 = vmatpush1.bf16.msra.mxu0 0
        %537 = vmatprep.subr.bf16.mxu0 0
        %538 = vmatpush1.bf16.msra.mxu0 0
        %539 = vmatprep.subr.bf16.mxu0 0
        %540 = vmatpush1.bf16.msra.mxu0 0
        %541 = vmatprep.subr.bf16.mxu0 0
        %542 = vmatpush1.bf16.msra.mxu0 0
        %543 = vmatprep.subr.bf16.mxu0 0
        %544 = vmatpush1.bf16.msra.mxu0 0
        %545 = vmatprep.mubr.bf16.mxu0 0
        %546 = vmatmul.mubr.bf16.gmra.mrb[0].mxu0 %v490
        %v547 = vpop.f32.mrb[0].mxu0
        %v548 = vadd.f32 %v421, %v547
        %v549 = vpop.f32.mrb[0].mxu0
        %v550 = vpop.f32.mrb[0].mxu0
        %v551 = vadd.f32 %v424, %v550
        %v552 = vpop.f32.mrb[0].mxu0
        %553 = vmatprep.mubr.bf16.mxu0 0
        %554 = vmatmul.mubr.bf16.gmra.mrb[0].mxu0 %v493
        %v555 = vpop.f32.mrb[0].mxu0
        %v556 = vadd.f32 %v429, %v555
        %v557 = vpop.f32.mrb[0].mxu0
        %v558 = vpop.f32.mrb[0].mxu0
        %v559 = vadd.f32 %v432, %v558
        %v560 = vpop.f32.mrb[0].mxu0
        %561 = vmatprep.mubr.bf16.mxu0 0
        %562 = vmatmul.mubr.bf16.gmra.mrb[0].mxu0 %v496
        %v563 = vpop.f32.mrb[0].mxu0
        %v564 = vadd.f32 %v437, %v563
        %v565 = vpop.f32.mrb[0].mxu0
        %v566 = vpop.f32.mrb[0].mxu0
        %v567 = vadd.f32 %v440, %v566
        %v568 = vpop.f32.mrb[0].mxu0
        %569 = vmatprep.mubr.bf16.mxu0 0
        %570 = vmatmul.mubr.bf16.gmra.mrb[0].mxu0 %v499
        %v571 = vpop.f32.mrb[0].mxu0
        %v572 = vadd.f32 %v445, %v571
        %v573 = vpop.f32.mrb[0].mxu0
        %v574 = vpop.f32.mrb[0].mxu0
        %v575 = vadd.f32 %v448, %v574
        %v576 = vpop.f32.mrb[0].mxu0
        %577 = vmatprep.mubr.bf16.mxu0 0
        %578 = vmatmul.mubr.bf16.gmra.mrb[0].mxu0 %v502
        %v579 = vpop.f32.mrb[0].mxu0
        %v580 = vadd.f32 %v453, %v579
        %v581 = vpop.f32.mrb[0].mxu0
        %v582 = vpop.f32.mrb[0].mxu0
        %v583 = vadd.f32 %v456, %v582
        %v584 = vpop.f32.mrb[0].mxu0
        %585 = vmatprep.mubr.bf16.mxu0 0
        %586 = vmatmul.mubr.bf16.gmra.mrb[0].mxu0 %v505
        %v587 = vpop.f32.mrb[0].mxu0
        %v588 = vadd.f32 %v461, %v587
        %v589 = vpop.f32.mrb[0].mxu0
        %v590 = vpop.f32.mrb[0].mxu0
        %v591 = vadd.f32 %v464, %v590
        %v592 = vpop.f32.mrb[0].mxu0
        %593 = vmatprep.mubr.bf16.mxu0 0
        %594 = vmatmul.mubr.bf16.gmra.mrb[0].mxu0 %v508
        %v595 = vpop.f32.mrb[0].mxu0
        %v596 = vadd.f32 %v469, %v595
        %v597 = vpop.f32.mrb[0].mxu0
        %v598 = vpop.f32.mrb[0].mxu0
        %v599 = vadd.f32 %v472, %v598
        %v600 = vpop.f32.mrb[0].mxu0
        %601 = vmatprep.mubr.bf16.mxu0 0
        %602 = vmatmul.mubr.bf16.gmra.mrb[0].mxu0 %v511
        %v603 = vpop.f32.mrb[0].mxu0
        %v604 = vadd.f32 %v477, %v603
        %v605 = vpop.f32.mrb[0].mxu0
        %v606 = vpop.f32.mrb[0].mxu0
        %v607 = vadd.f32 %v480, %v606
        %v608 = vpop.f32.mrb[0].mxu0
        %609 = vdwg.mxu0
        %v610 = vld [vmem:[%s4] sm:$0x1]
        %v612 = vlaneseq
        %v613 = vshrl.u32 %v612, 7
        %v614 = vsub.s32 0, %v613
        %v615 = vrot.slane %v610, %v614
        %v617 = vadd.f32 %v548, %v615
        %v618 = vadd.f32 %v551, %v615
        %v619 = vadd.f32 %v556, %v615
        %v620 = vadd.f32 %v559, %v615
        %v621 = vadd.f32 %v564, %v615
        %v622 = vadd.f32 %v567, %v615
        %v623 = vadd.f32 %v572, %v615
        %v624 = vadd.f32 %v575, %v615
        %v625 = vadd.f32 %v580, %v615
        %v626 = vadd.f32 %v583, %v615
        %v627 = vadd.f32 %v588, %v615
        %v628 = vadd.f32 %v591, %v615
        %v629 = vadd.f32 %v596, %v615
        %v630 = vadd.f32 %v599, %v615
        %v631 = vadd.f32 %v604, %v615
        %v632 = vadd.f32 %v607, %v615
        %v633 = vand.u32 2147483647, %v617
        %v634 = vand.u32 2147483647, %v618
        %v635 = vand.u32 2147483647, %v619
        %v636 = vand.u32 2147483647, %v620
        %v637 = vand.u32 2147483647, %v621
        %v638 = vand.u32 2147483647, %v622
        %v639 = vand.u32 2147483647, %v623
        %v640 = vand.u32 2147483647, %v624
        %v641 = vand.u32 2147483647, %v625
        %v642 = vand.u32 2147483647, %v626
        %v643 = vand.u32 2147483647, %v627
        %v644 = vand.u32 2147483647, %v628
        %v645 = vand.u32 2147483647, %v629
        %v646 = vand.u32 2147483647, %v630
        %v647 = vand.u32 2147483647, %v631
        %v648 = vand.u32 2147483647, %v632
        %v649 = vsub.f32 0.0, %v633
        %v650 = vsub.f32 0.0, %v634
        %v651 = vsub.f32 0.0, %v635
        %v652 = vsub.f32 0.0, %v636
        %v653 = vsub.f32 0.0, %v637
        %v654 = vsub.f32 0.0, %v638
        %v655 = vsub.f32 0.0, %v639
        %v656 = vsub.f32 0.0, %v640
        %v657 = vsub.f32 0.0, %v641
        %v658 = vsub.f32 0.0, %v642
        %v659 = vsub.f32 0.0, %v643
        %v660 = vsub.f32 0.0, %v644
        %v661 = vsub.f32 0.0, %v645
        %v662 = vsub.f32 0.0, %v646
        %v663 = vsub.f32 0.0, %v647
        %v664 = vsub.f32 0.0, %v648
        %v665 = vmul.f32 %v649, 1.442695
        %v666 = vpow.pop %v665
        %v667 = vmul.f32 %v650, 1.442695
        %v668 = vpow.pop %v667
        %v669 = vmul.f32 %v651, 1.442695
        %v670 = vpow.pop %v669
        %v671 = vmul.f32 %v652, 1.442695
        %v672 = vpow.pop %v671
        %v673 = vmul.f32 %v653, 1.442695
        %v674 = vpow.pop %v673
        %v675 = vmul.f32 %v654, 1.442695
        %v676 = vpow.pop %v675
        %v677 = vmul.f32 %v655, 1.442695
        %v678 = vpow.pop %v677
        %v679 = vmul.f32 %v656, 1.442695
        %v680 = vpow.pop %v679
        %v681 = vmul.f32 %v657, 1.442695
        %v682 = vpow.pop %v681
        %v683 = vmul.f32 %v658, 1.442695
        %v684 = vpow.pop %v683
        %v685 = vmul.f32 %v659, 1.442695
        %v686 = vpow.pop %v685
        %v687 = vmul.f32 %v660, 1.442695
        %v688 = vpow.pop %v687
        %v689 = vmul.f32 %v661, 1.442695
        %v690 = vpow.pop %v689
        %v691 = vmul.f32 %v662, 1.442695
        %v692 = vpow.pop %v691
        %v693 = vmul.f32 %v663, 1.442695
        %v694 = vpow.pop %v693
        %v695 = vmul.f32 %v664, 1.442695
        %v696 = vpow.pop %v695
        %v697 = vadd.f32 %v666, 1.0
        %v698 = vadd.f32 %v668, 1.0
        %v699 = vadd.f32 %v670, 1.0
        %v700 = vadd.f32 %v672, 1.0
        %v701 = vadd.f32 %v674, 1.0
        %v702 = vadd.f32 %v676, 1.0
        %v703 = vadd.f32 %v678, 1.0
        %v704 = vadd.f32 %v680, 1.0
        %v705 = vadd.f32 %v682, 1.0
        %v706 = vadd.f32 %v684, 1.0
        %v707 = vadd.f32 %v686, 1.0
        %v708 = vadd.f32 %v688, 1.0
        %v709 = vadd.f32 %v690, 1.0
        %v710 = vadd.f32 %v692, 1.0
        %v711 = vadd.f32 %v694, 1.0
        %v712 = vadd.f32 %v696, 1.0
        %v713 = vlog2.pop %v697
        %v714 = vmul.f32 %v713, 0.6931472
        %v715 = vlog2.pop %v698
        %v716 = vmul.f32 %v715, 0.6931472
        %v717 = vlog2.pop %v699
        %v718 = vmul.f32 %v717, 0.6931472
        %v719 = vlog2.pop %v700
        %v720 = vmul.f32 %v719, 0.6931472
        %v721 = vlog2.pop %v701
        %v722 = vmul.f32 %v721, 0.6931472
        %v723 = vlog2.pop %v702
        %v724 = vmul.f32 %v723, 0.6931472
        %v725 = vlog2.pop %v703
        %v726 = vmul.f32 %v725, 0.6931472
        %v727 = vlog2.pop %v704
        %v728 = vmul.f32 %v727, 0.6931472
        %v729 = vlog2.pop %v705
        %v730 = vmul.f32 %v729, 0.6931472
        %v731 = vlog2.pop %v706
        %v732 = vmul.f32 %v731, 0.6931472
        %v733 = vlog2.pop %v707
        %v734 = vmul.f32 %v733, 0.6931472
        %v735 = vlog2.pop %v708
        %v736 = vmul.f32 %v735, 0.6931472
        %v737 = vlog2.pop %v709
        %v738 = vmul.f32 %v737, 0.6931472
        %v739 = vlog2.pop %v710
        %v740 = vmul.f32 %v739, 0.6931472
        %v741 = vlog2.pop %v711
        %v742 = vmul.f32 %v741, 0.6931472
        %v743 = vlog2.pop %v712
        %v744 = vmul.f32 %v743, 0.6931472
        %v745 = vmax.f32 %v617, 0.0
        %v746 = vmax.f32 %v618, 0.0
        %v747 = vmax.f32 %v619, 0.0
        %v748 = vmax.f32 %v620, 0.0
        %v749 = vmax.f32 %v621, 0.0
        %v750 = vmax.f32 %v622, 0.0
        %v751 = vmax.f32 %v623, 0.0
        %v752 = vmax.f32 %v624, 0.0
        %v753 = vmax.f32 %v625, 0.0
        %v754 = vmax.f32 %v626, 0.0
        %v755 = vmax.f32 %v627, 0.0
        %v756 = vmax.f32 %v628, 0.0
        %v757 = vmax.f32 %v629, 0.0
        %v758 = vmax.f32 %v630, 0.0
        %v759 = vmax.f32 %v631, 0.0
        %v760 = vmax.f32 %v632, 0.0
        %v761 = vadd.f32 %v745, %v714
        %v762 = vadd.f32 %v746, %v716
        %v763 = vadd.f32 %v747, %v718
        %v764 = vadd.f32 %v748, %v720
        %v765 = vadd.f32 %v749, %v722
        %v766 = vadd.f32 %v750, %v724
        %v767 = vadd.f32 %v751, %v726
        %v768 = vadd.f32 %v752, %v728
        %v769 = vadd.f32 %v753, %v730
        %v770 = vadd.f32 %v754, %v732
        %v771 = vadd.f32 %v755, %v734
        %v772 = vadd.f32 %v756, %v736
        %v773 = vadd.f32 %v757, %v738
        %v774 = vadd.f32 %v758, %v740
        %v775 = vadd.f32 %v759, %v742
        %v776 = vadd.f32 %v760, %v744
        %v777 = vpack.c.bf16 %v762, %v761
        %v778 = vpack.c.bf16 %v764, %v763
        %v779 = vpack.c.bf16 %v766, %v765
        %v780 = vpack.c.bf16 %v768, %v767
        %v781 = vpack.c.bf16 %v770, %v769
        %v782 = vpack.c.bf16 %v772, %v771
        %v783 = vpack.c.bf16 %v774, %v773
        %v784 = vpack.c.bf16 %v776, %v775
        %v785 = vld [vmem:[%s5] sm:$0xf]
        %v786 = vld [vmem:[%s5 + $0x4] sm:$0xf]
        %v787 = vld [vmem:[%s5 + $0x8] sm:$0xf]
        %v788 = vld [vmem:[%s5 + $0xc] sm:$0xf]
        %v789 = vld [vmem:[%s5 + $0x10] sm:$0xf]
        %v790 = vld [vmem:[%s5 + $0x14] sm:$0xf]
        %v791 = vld [vmem:[%s5 + $0x18] sm:$0xf]
        %v792 = vld [vmem:[%s5 + $0x1c] sm:$0xf]
        %v793 = vld [vmem:[%s5 + $0x20] sm:$0xf]
        %v794 = vld [vmem:[%s5 + $0x24] sm:$0xf]
        %v795 = vld [vmem:[%s5 + $0x28] sm:$0xf]
        %v796 = vld [vmem:[%s5 + $0x2c] sm:$0xf]
        %v797 = vld [vmem:[%s5 + $0x30] sm:$0xf]
        %v798 = vld [vmem:[%s5 + $0x34] sm:$0xf]
        %v799 = vld [vmem:[%s5 + $0x38] sm:$0xf]
        %v800 = vld [vmem:[%s5 + $0x3c] sm:$0xf]
        %v801 = vld [vmem:[%s6] sm:$0x1]
        %v803 = vlaneseq
        %v804 = vshrl.u32 %v803, 7
        %v805 = vsub.s32 0, %v804
        %v806 = vrot.slane %v801, %v805
        %v824 = vunpack.c.l.b16 %v785
        %v825 = vunpack.c.l.b16 %v786
        %v826 = vunpack.c.l.b16 %v787
        %v827 = vunpack.c.l.b16 %v788
        %v828 = vunpack.c.l.b16 %v789
        %v829 = vunpack.c.l.b16 %v790
        %v830 = vunpack.c.l.b16 %v791
        %v831 = vunpack.c.l.b16 %v792
        %v832 = vunpack.c.l.b16 %v793
        %v833 = vunpack.c.l.b16 %v794
        %v834 = vunpack.c.l.b16 %v795
        %v835 = vunpack.c.l.b16 %v796
        %v836 = vunpack.c.l.b16 %v797
        %v837 = vunpack.c.l.b16 %v798
        %v838 = vunpack.c.l.b16 %v799
        %v839 = vunpack.c.l.b16 %v800
        %v840 = vpack.c.b16 %v825, %v824
        %v841 = vpack.c.b16 %v827, %v826
        %v842 = vpack.c.b16 %v829, %v828
        %v843 = vpack.c.b16 %v831, %v830
        %v844 = vpack.c.b16 %v833, %v832
        %v845 = vpack.c.b16 %v835, %v834
        %v846 = vpack.c.b16 %v837, %v836
        %v847 = vpack.c.b16 %v839, %v838
        %856 = vmatprep.subr.bf16.mxu0 0
        %857 = vmatpush1.bf16.msra.mxu0 %v840
        %858 = vmatprep.subr.bf16.mxu0 0
        %859 = vmatpush1.bf16.msra.mxu0 %v841
        %860 = vmatprep.subr.bf16.mxu0 0
        %861 = vmatpush1.bf16.msra.mxu0 %v842
        %862 = vmatprep.subr.bf16.mxu0 0
        %863 = vmatpush1.bf16.msra.mxu0 %v843
        %864 = vmatprep.subr.bf16.mxu0 0
        %865 = vmatpush1.bf16.msra.mxu0 %v844
        %866 = vmatprep.subr.bf16.mxu0 0
        %867 = vmatpush1.bf16.msra.mxu0 %v845
        %868 = vmatprep.subr.bf16.mxu0 0
        %869 = vmatpush1.bf16.msra.mxu0 %v846
        %870 = vmatprep.subr.bf16.mxu0 0
        %871 = vmatpush1.bf16.msra.mxu0 %v847
        %872 = vmatprep.subr.bf16.mxu0 0
        %873 = vmatpush1.bf16.msra.mxu0 0
        %874 = vmatprep.subr.bf16.mxu0 0
        %875 = vmatpush1.bf16.msra.mxu0 0
        %876 = vmatprep.subr.bf16.mxu0 0
        %877 = vmatpush1.bf16.msra.mxu0 0
        %878 = vmatprep.subr.bf16.mxu0 0
        %879 = vmatpush1.bf16.msra.mxu0 0
        %880 = vmatprep.subr.bf16.mxu0 0
        %881 = vmatpush1.bf16.msra.mxu0 0
        %882 = vmatprep.subr.bf16.mxu0 0
        %883 = vmatpush1.bf16.msra.mxu0 0
        %884 = vmatprep.subr.bf16.mxu0 0
        %885 = vmatpush1.bf16.msra.mxu0 0
        %886 = vmatprep.subr.bf16.mxu0 0
        %887 = vmatpush1.bf16.msra.mxu0 0
        %888 = vmatprep.mubr.bf16.mxu0 0
        %889 = vmatmul.mubr.bf16.gmra.mrb[0].mxu0 %v777
        %v890 = vpop.f32.mrb[0].mxu0
        %v891 = vadd.f32 %v806, %v890
        %v892 = vpop.f32.mrb[0].mxu0
        %v893 = vpop.f32.mrb[0].mxu0
        %v894 = vadd.f32 %v806, %v893
        %v895 = vpop.f32.mrb[0].mxu0
        %896 = vmatprep.mubr.bf16.mxu0 0
        %897 = vmatmul.mubr.bf16.gmra.mrb[0].mxu0 %v778
        %v898 = vpop.f32.mrb[0].mxu0
        %v899 = vadd.f32 %v806, %v898
        %v900 = vpop.f32.mrb[0].mxu0
        %v901 = vpop.f32.mrb[0].mxu0
        %v902 = vadd.f32 %v806, %v901
        %v903 = vpop.f32.mrb[0].mxu0
        %904 = vmatprep.mubr.bf16.mxu0 0
        %905 = vmatmul.mubr.bf16.gmra.mrb[0].mxu0 %v779
        %v906 = vpop.f32.mrb[0].mxu0
        %v907 = vadd.f32 %v806, %v906
        %v908 = vpop.f32.mrb[0].mxu0
        %v909 = vpop.f32.mrb[0].mxu0
        %v910 = vadd.f32 %v806, %v909
        %v911 = vpop.f32.mrb[0].mxu0
        %912 = vmatprep.mubr.bf16.mxu0 0
        %913 = vmatmul.mubr.bf16.gmra.mrb[0].mxu0 %v780
        %v914 = vpop.f32.mrb[0].mxu0
        %v915 = vadd.f32 %v806, %v914
        %v916 = vpop.f32.mrb[0].mxu0
        %v917 = vpop.f32.mrb[0].mxu0
        %v918 = vadd.f32 %v806, %v917
        %v919 = vpop.f32.mrb[0].mxu0
        %920 = vmatprep.mubr.bf16.mxu0 0
        %921 = vmatmul.mubr.bf16.gmra.mrb[0].mxu0 %v781
        %v922 = vpop.f32.mrb[0].mxu0
        %v923 = vadd.f32 %v806, %v922
        %v924 = vpop.f32.mrb[0].mxu0
        %v925 = vpop.f32.mrb[0].mxu0
        %v926 = vadd.f32 %v806, %v925
        %v927 = vpop.f32.mrb[0].mxu0
        %928 = vmatprep.mubr.bf16.mxu0 0
        %929 = vmatmul.mubr.bf16.gmra.mrb[0].mxu0 %v782
        %v930 = vpop.f32.mrb[0].mxu0
        %v931 = vadd.f32 %v806, %v930
        %v932 = vpop.f32.mrb[0].mxu0
        %v933 = vpop.f32.mrb[0].mxu0
        %v934 = vadd.f32 %v806, %v933
        %v935 = vpop.f32.mrb[0].mxu0
        %936 = vmatprep.mubr.bf16.mxu0 0
        %937 = vmatmul.mubr.bf16.gmra.mrb[0].mxu0 %v783
        %v938 = vpop.f32.mrb[0].mxu0
        %v939 = vadd.f32 %v806, %v938
        %v940 = vpop.f32.mrb[0].mxu0
        %v941 = vpop.f32.mrb[0].mxu0
        %v942 = vadd.f32 %v806, %v941
        %v943 = vpop.f32.mrb[0].mxu0
        %944 = vmatprep.mubr.bf16.mxu0 0
        %945 = vmatmul.mubr.bf16.gmra.mrb[0].mxu0 %v784
        %v946 = vpop.f32.mrb[0].mxu0
        %v947 = vadd.f32 %v806, %v946
        %v948 = vpop.f32.mrb[0].mxu0
        %v949 = vpop.f32.mrb[0].mxu0
        %v950 = vadd.f32 %v806, %v949
        %v951 = vpop.f32.mrb[0].mxu0
        %952 = vdwg.mxu0
        %v953 = vand.u32 2147483647, %v891
        %v954 = vand.u32 2147483647, %v894
        %v955 = vand.u32 2147483647, %v899
        %v956 = vand.u32 2147483647, %v902
        %v957 = vand.u32 2147483647, %v907
        %v958 = vand.u32 2147483647, %v910
        %v959 = vand.u32 2147483647, %v915
        %v960 = vand.u32 2147483647, %v918
        %v961 = vand.u32 2147483647, %v923
        %v962 = vand.u32 2147483647, %v926
        %v963 = vand.u32 2147483647, %v931
        %v964 = vand.u32 2147483647, %v934
        %v965 = vand.u32 2147483647, %v939
        %v966 = vand.u32 2147483647, %v942
        %v967 = vand.u32 2147483647, %v947
        %v968 = vand.u32 2147483647, %v950
        %v969 = vsub.f32 0.0, %v953
        %v970 = vsub.f32 0.0, %v954
        %v971 = vsub.f32 0.0, %v955
        %v972 = vsub.f32 0.0, %v956
        %v973 = vsub.f32 0.0, %v957
        %v974 = vsub.f32 0.0, %v958
        %v975 = vsub.f32 0.0, %v959
        %v976 = vsub.f32 0.0, %v960
        %v977 = vsub.f32 0.0, %v961
        %v978 = vsub.f32 0.0, %v962
        %v979 = vsub.f32 0.0, %v963
        %v980 = vsub.f32 0.0, %v964
        %v981 = vsub.f32 0.0, %v965
        %v982 = vsub.f32 0.0, %v966
        %v983 = vsub.f32 0.0, %v967
        %v984 = vsub.f32 0.0, %v968
        %v985 = vmul.f32 %v969, 1.442695
        %v986 = vpow.pop %v985
        %v987 = vmul.f32 %v970, 1.442695
        %v988 = vpow.pop %v987
        %v989 = vmul.f32 %v971, 1.442695
        %v990 = vpow.pop %v989
        %v991 = vmul.f32 %v972, 1.442695
        %v992 = vpow.pop %v991
        %v993 = vmul.f32 %v973, 1.442695
        %v994 = vpow.pop %v993
        %v995 = vmul.f32 %v974, 1.442695
        %v996 = vpow.pop %v995
        %v997 = vmul.f32 %v975, 1.442695
        %v998 = vpow.pop %v997
        %v999 = vmul.f32 %v976, 1.442695
        %v1000 = vpow.pop %v999
        %v1001 = vmul.f32 %v977, 1.442695
        %v1002 = vpow.pop %v1001
        %v1003 = vmul.f32 %v978, 1.442695
        %v1004 = vpow.pop %v1003
        %v1005 = vmul.f32 %v979, 1.442695
        %v1006 = vpow.pop %v1005
        %v1007 = vmul.f32 %v980, 1.442695
        %v1008 = vpow.pop %v1007
        %v1009 = vmul.f32 %v981, 1.442695
        %v1010 = vpow.pop %v1009
        %v1011 = vmul.f32 %v982, 1.442695
        %v1012 = vpow.pop %v1011
        %v1013 = vmul.f32 %v983, 1.442695
        %v1014 = vpow.pop %v1013
        %v1015 = vmul.f32 %v984, 1.442695
        %v1016 = vpow.pop %v1015
        %v1017 = vadd.f32 %v986, 1.0
        %v1018 = vadd.f32 %v988, 1.0
        %v1019 = vadd.f32 %v990, 1.0
        %v1020 = vadd.f32 %v992, 1.0
        %v1021 = vadd.f32 %v994, 1.0
        %v1022 = vadd.f32 %v996, 1.0
        %v1023 = vadd.f32 %v998, 1.0
        %v1024 = vadd.f32 %v1000, 1.0
        %v1025 = vadd.f32 %v1002, 1.0
        %v1026 = vadd.f32 %v1004, 1.0
        %v1027 = vadd.f32 %v1006, 1.0
        %v1028 = vadd.f32 %v1008, 1.0
        %v1029 = vadd.f32 %v1010, 1.0
        %v1030 = vadd.f32 %v1012, 1.0
        %v1031 = vadd.f32 %v1014, 1.0
        %v1032 = vadd.f32 %v1016, 1.0
        %v1033 = vlog2.pop %v1017
        %v1034 = vmul.f32 %v1033, 0.6931472
        %v1035 = vlog2.pop %v1018
        %v1036 = vmul.f32 %v1035, 0.6931472
        %v1037 = vlog2.pop %v1019
        %v1038 = vmul.f32 %v1037, 0.6931472
        %v1039 = vlog2.pop %v1020
        %v1040 = vmul.f32 %v1039, 0.6931472
        %v1041 = vlog2.pop %v1021
        %v1042 = vmul.f32 %v1041, 0.6931472
        %v1043 = vlog2.pop %v1022
        %v1044 = vmul.f32 %v1043, 0.6931472
        %v1045 = vlog2.pop %v1023
        %v1046 = vmul.f32 %v1045, 0.6931472
        %v1047 = vlog2.pop %v1024
        %v1048 = vmul.f32 %v1047, 0.6931472
        %v1049 = vlog2.pop %v1025
        %v1050 = vmul.f32 %v1049, 0.6931472
        %v1051 = vlog2.pop %v1026
        %v1052 = vmul.f32 %v1051, 0.6931472
        %v1053 = vlog2.pop %v1027
        %v1054 = vmul.f32 %v1053, 0.6931472
        %v1055 = vlog2.pop %v1028
        %v1056 = vmul.f32 %v1055, 0.6931472
        %v1057 = vlog2.pop %v1029
        %v1058 = vmul.f32 %v1057, 0.6931472
        %v1059 = vlog2.pop %v1030
        %v1060 = vmul.f32 %v1059, 0.6931472
        %v1061 = vlog2.pop %v1031
        %v1062 = vmul.f32 %v1061, 0.6931472
        %v1063 = vlog2.pop %v1032
        %v1064 = vmul.f32 %v1063, 0.6931472
        %v1065 = vmax.f32 %v891, 0.0
        %v1066 = vmax.f32 %v894, 0.0
        %v1067 = vmax.f32 %v899, 0.0
        %v1068 = vmax.f32 %v902, 0.0
        %v1069 = vmax.f32 %v907, 0.0
        %v1070 = vmax.f32 %v910, 0.0
        %v1071 = vmax.f32 %v915, 0.0
        %v1072 = vmax.f32 %v918, 0.0
        %v1073 = vmax.f32 %v923, 0.0
        %v1074 = vmax.f32 %v926, 0.0
        %v1075 = vmax.f32 %v931, 0.0
        %v1076 = vmax.f32 %v934, 0.0
        %v1077 = vmax.f32 %v939, 0.0
        %v1078 = vmax.f32 %v942, 0.0
        %v1079 = vmax.f32 %v947, 0.0
        %v1080 = vmax.f32 %v950, 0.0
        %v1081 = vadd.f32 %v1065, %v1034
        %v1082 = vadd.f32 %v1066, %v1036
        %v1083 = vadd.f32 %v1067, %v1038
        %v1084 = vadd.f32 %v1068, %v1040
        %v1085 = vadd.f32 %v1069, %v1042
        %v1086 = vadd.f32 %v1070, %v1044
        %v1087 = vadd.f32 %v1071, %v1046
        %v1088 = vadd.f32 %v1072, %v1048
        %v1089 = vadd.f32 %v1073, %v1050
        %v1090 = vadd.f32 %v1074, %v1052
        %v1091 = vadd.f32 %v1075, %v1054
        %v1092 = vadd.f32 %v1076, %v1056
        %v1093 = vadd.f32 %v1077, %v1058
        %v1094 = vadd.f32 %v1078, %v1060
        %v1095 = vadd.f32 %v1079, %v1062
        %v1096 = vadd.f32 %v1080, %v1064
        %1097 = vst [vmem:[%s288] sm:$0xff] %v1081
        %1098 = vst [vmem:[%s288 + $0x8] sm:$0xff] %v1082
        %1099 = vst [vmem:[%s288 + $0x10] sm:$0xff] %v1083
        %1100 = vst [vmem:[%s288 + $0x18] sm:$0xff] %v1084
        %1101 = vst [vmem:[%s288 + $0x20] sm:$0xff] %v1085
        %1102 = vst [vmem:[%s288 + $0x28] sm:$0xff] %v1086
        %1103 = vst [vmem:[%s288 + $0x30] sm:$0xff] %v1087
        %1104 = vst [vmem:[%s288 + $0x38] sm:$0xff] %v1088
        %1105 = vst [vmem:[%s288 + $0x40] sm:$0xff] %v1089
        %1106 = vst [vmem:[%s288 + $0x48] sm:$0xff] %v1090
        %1107 = vst [vmem:[%s288 + $0x50] sm:$0xff] %v1091
        %1108 = vst [vmem:[%s288 + $0x58] sm:$0xff] %v1092
        %1109 = vst [vmem:[%s288 + $0x60] sm:$0xff] %v1093
        %1110 = vst [vmem:[%s288 + $0x68] sm:$0xff] %v1094
        %1111 = vst [vmem:[%s288 + $0x70] sm:$0xff] %v1095
        %1112 = vst [vmem:[%s288 + $0x78] sm:$0xff] %v1096
        %s1113 = sand.u32 %s186, 1
        %s1114 = scalar_lea.sflag [#allocation3], %s1113
        %s1115 = sand.u32 %s186, 1
        %s1116 = smul.addr %s1115, 128
        %s1117 = scalar_lea.vmem [#allocation2], %s1116
        // Predicated region
        $region49: #{tpu_custom_call.1} parent=47 // pred_check
          %p1118 = pneg %p196
        $region50: #{tpu_custom_call.1} parent=47 // pred_check_branch
          %1120 = sbr.rel (%p1118) target = $region52
        $region51: #{tpu_custom_call.1} parent=47 // pred_region
          %s1121 = smul.u32 16, %s21
          %s1123 = ssub.s32 2048, 2048
          %1124 = vsyncadd %s1114, %s1123
          %s1125 = smul.addr %s1121, 128
          %s1126 = scalar_lea.hbm %s7, %s1125
          %s1127 = sshll.u32 %s1117, 4
          %s1128 = int_to_ptr.vmem [resolvable:$true] %s1127
          %1133 = dma.vmem_to_hbm [thread:$0]  %s1128, 2048, %s1126, %s1114, 128, 128, 8
        $region52: #{tpu_custom_call.1} parent=47 // pred_fallthru
          _
      $region48: #{tpu_custom_call.1} parent=5 // pred_fallthru
        _
      %p1134 = scmp.le.s32.totalorder 2, %s16
      // Predicated region
      $region53: #{tpu_custom_call.1} parent=5 // pred_check
        %p1135 = pneg %p1134
      $region54: #{tpu_custom_call.1} parent=5 // pred_check_branch
        %1137 = sbr.rel (%p1135) target = $region56
      $region55: #{tpu_custom_call.1} parent=5 // pred_region
        %s1138 = ssub.s32 %s16, 2
        // Predicated region
        $region57: #{tpu_custom_call.1} parent=55 // pred_check
          %p1139 = pneg %p202
        $region58: #{tpu_custom_call.1} parent=55 // pred_check_branch
          %1141 = sbr.rel (%p1139) target = $region60
        $region59: #{tpu_custom_call.1} parent=55 // pred_region
          %s1142 = sand.u32 %s187, 1
          %s1143 = scalar_lea.sflag [#allocation3], %s1142
          %s1144 = sand.u32 %s187, 1
          %s1145 = smul.addr %s1144, 128
          %s1146 = scalar_lea.vmem [#allocation2], %s1145
          %1147 = dma.done %s1143, 2048
        $region60: #{tpu_custom_call.1} parent=55 // pred_fallthru
          _
      $region56: #{tpu_custom_call.1} parent=5 // pred_fallthru
        _
    $region6: #{tpu_custom_call.1} parent=1 // loop_footer
      %s20 = sadd.s32 1, %s16
    $region7: #{tpu_custom_call.1} parent=1 // loop_footer_branch
      %15 = sbr.rel target = $region3
    $region8: #{tpu_custom_call.1} parent=1 // loop_exit
      _
    %1148 = vsyncpa [#allocation3], 1
    %s1149 = scalar_lea.sflag [#allocation3], 1
    %1150 = vsyncpa %s1149, 1

</llo_original>
